<compile_context>
chip_gen: v6e
topology: v6e:2x2x1
jax: 0.10.0
libtpu: 0.0.40
codegen_flags: <defaults>
</compile_context>

<pallas_src>
import math
import functools

import jax
import jax.numpy as jnp
from jax import lax
from jax.experimental import pallas as pl
from jax.experimental.pallas import tpu as pltpu


# ----------------------------------------------------------------------------
# Fused Pallas kernel (whole forward, single grid point)
# ----------------------------------------------------------------------------

def _fused_mha_kernel(x_ref, wqkv_ref, bqkv_ref, wout_ref, bout_ref, o_ref,
                      *, B, S, H, Dh):
    E = H * Dh
    scale = 1.0 / math.sqrt(Dh)

    x = x_ref[...]                                                     # (B*S, E)

    # qkv = qkv_proj(x): one MXU matmul over all (b, s) rows.
    qkv = lax.dot_general(x, wqkv_ref[...], (((1,), (0,)), ((), ())),
                          preferred_element_type=jnp.float32) + bqkv_ref[...]   # (B*S, 3E)

    # Per PyTorch reshape(B,S,H,3Dh): head h's q/k/v live in qkv columns
    # [h*3Dh : h*3Dh+Dh], [+Dh : +2Dh], [+2Dh : +3Dh].
    z_rows = []
    for b in range(B):                      # B, H are tiny & static -> unrolled
        qkv_b = qkv[b * S:(b + 1) * S, :]                              # (S, 3E)
        ot_cols = []
        for h in range(H):
            base = h * 3 * Dh
            q = qkv_b[:, base:base + Dh]                               # (S, Dh)
            k = qkv_b[:, base + Dh:base + 2 * Dh]                      # (S, Dh)
            v = qkv_b[:, base + 2 * Dh:base + 3 * Dh]                  # (S, Dh)

            # scores = Q @ K^T * scale  (contract Dh vs Dh, no explicit transpose)
            s = lax.dot_general(q, k, (((1,), (1,)), ((), ())),
                                preferred_element_type=jnp.float32) * scale     # (S, S)
            m = jnp.max(s, axis=-1, keepdims=True)
            e = jnp.exp(s - m)
            p = e * pl.reciprocal(jnp.sum(e, axis=-1, keepdims=True))  # softmax
            # attention dropout == identity (eval mode)

            # O^T[d, s2] = sum_t V[t, d] * P[s2, t]  -> (Dh, S), already transposed
            o_t = lax.dot_general(v, p, (((0,), (1,)), ((), ())),
                                  preferred_element_type=jnp.float32)
            ot_cols.append(o_t)

        # Z_b[d, h*S + s2] = attn_output[h, b, s2, d]
        #   == PyTorch attn_output.permute(1, 3, 0, 2)[b] flattened row-major.
        z_rows.append(jnp.concatenate(ot_cols, axis=1))                # (Dh, H*S)

    z = jnp.concatenate(z_rows, axis=0)                                # (B*Dh, H*S)
    # Row-major reshape reproduces the exact PyTorch .reshape(B, S, E) element
    # order.  (At these dims Dh == S and H*S == E, so the reshape is a no-op.)
    y = z.reshape(B * S, E)

    # output = out_proj(y); out_dropout == identity (eval mode).
    o_ref[...] = lax.dot_general(y, wout_ref[...], (((1,), (0,)), ((), ())),
                                 preferred_element_type=jnp.float32) + bout_ref[...]


# ----------------------------------------------------------------------------
# Wrapper
# ----------------------------------------------------------------------------

def temporal_mha_forward(x, params, num_heads):
    B, S, E = x.shape
    H = num_heads
    Dh = E // H

    x2 = x.reshape(B * S, E)
    bqkv = params["b_qkv"].reshape(1, 3 * E)
    bout = params["b_out"].reshape(1, E)

    kern = functools.partial(_fused_mha_kernel, B=B, S=S, H=H, Dh=Dh)
    out = pl.pallas_call(
        kern,
        out_shape=jax.ShapeDtypeStruct((B * S, E), jnp.float32),
        grid=(1,),
        in_specs=[
            pl.BlockSpec((B * S, E), lambda i: (0, 0)),      # x
            pl.BlockSpec((E, 3 * E), lambda i: (0, 0)),      # w_qkv
            pl.BlockSpec((1, 3 * E), lambda i: (0, 0)),      # b_qkv
            pl.BlockSpec((E, E), lambda i: (0, 0)),          # w_out
            pl.BlockSpec((1, E), lambda i: (0, 0)),          # b_out
        ],
        out_specs=pl.BlockSpec((B * S, E), lambda i: (0, 0)),
        compiler_params=pltpu.CompilerParams(
            dimension_semantics=("arbitrary",)),
    )(x2, params["w_qkv"], bqkv, params["w_out"], bout)

    return out.reshape(B, S, E)


# ----------------------------------------------------------------------------
# Pure-JAX reference (literal transcription of the PyTorch forward) for checking
# ----------------------------------------------------------------------------

def reference_forward(x, params, num_heads):
    B, S, E = x.shape
    H = num_heads
    Dh = E // H
    qkv = x @ params["w_qkv"] + params["b_qkv"]
    qkv = qkv.reshape(B, S, H, 3 * Dh)
    qkv = jnp.transpose(qkv, (2, 0, 3, 1))
    q, k, v = jnp.split(qkv, 3, axis=2)
    scores = jnp.einsum("hbds,hbdt->hbst", q, k) / math.sqrt(Dh)
    w = jax.nn.softmax(scores, axis=-1)
    attn = jnp.einsum("hbst,hbdt->hbsd", w, v)
    attn = jnp.transpose(attn, (1, 3, 0, 2)).reshape(B, S, E)
    return attn @ params["w_out"] + params["b_out"]


# ----------------------------------------------------------------------------
# Main
# ----------------------------------------------------------------------------

if __name__ == "__main__":
    B, S, E, H = 2, 8, 32, 4   # batch, seq, embed_dim, num_heads (head_dim = 8)

    key = jax.random.PRNGKey(0)
    kx, kw1, kb1, kw2, kb2 = jax.random.split(key, 5)

    x = jax.random.normal(kx, (B, S, E), dtype=jnp.float32)

    # nn.Linear shapes: weight (out, in), bias (out,).  Weights stored
    # pre-transposed as (in, out) so y = x @ w + b.
    bound1 = 1.0 / math.sqrt(E)
    params = {
        "w_qkv": jax.random.uniform(kw1, (E, 3 * E), jnp.float32, -bound1, bound1),
        "b_qkv": jax.random.uniform(kb1, (3 * E,), jnp.float32, -bound1, bound1),
        "w_out": jax.random.uniform(kw2, (E, E), jnp.float32, -bound1, bound1),
        "b_out": jax.random.uniform(kb2, (E,), jnp.float32, -bound1, bound1),
    }

    out = temporal_mha_forward(x, params, num_heads=H)
    out = jax.block_until_ready(out)

    ref = reference_forward(x, params, num_heads=H)
    assert out.shape == (B, S, E)
    assert jnp.allclose(out, ref, atol=1e-5, rtol=1e-5), "mismatch vs reference"

    print("KERNEL_OK")
</pallas_src>

<mosaic_0001>
module attributes {stable_mosaic.version = 11 : i64} {
  func.func @_fused_mha_kernel(%arg0: i32, %arg1: memref<16x32xf32, #tpu.memory_space<vmem>>, %arg2: memref<32x96xf32, #tpu.memory_space<vmem>>, %arg3: memref<1x96xf32, #tpu.memory_space<vmem>>, %arg4: memref<32x32xf32, #tpu.memory_space<vmem>>, %arg5: memref<1x32xf32, #tpu.memory_space<vmem>>, %arg6: memref<16x32xf32, #tpu.memory_space<vmem>>) attributes {dimension_semantics = [#tpu.dimension_semantics<arbitrary>], iteration_bounds = array<i64: 1>, scalar_prefetch = 0 : i64, scratch_operands = 0 : i64, tpu.core_type = #tpu.core_type<tc>, window_params = [{pipeline_mode = #tpu.pipeline_mode<synchronous>, transform_indices = @transform_0, window_bounds = array<i64: 16, 32>}, {pipeline_mode = #tpu.pipeline_mode<synchronous>, transform_indices = @transform_1, window_bounds = array<i64: 32, 96>}, {pipeline_mode = #tpu.pipeline_mode<synchronous>, transform_indices = @transform_2, window_bounds = array<i64: 1, 96>}, {pipeline_mode = #tpu.pipeline_mode<synchronous>, transform_indices = @transform_3, window_bounds = array<i64: 32, 32>}, {pipeline_mode = #tpu.pipeline_mode<synchronous>, transform_indices = @transform_4, window_bounds = array<i64: 1, 32>}, {pipeline_mode = #tpu.pipeline_mode<synchronous>, transform_indices = @transform_5, window_bounds = array<i64: 16, 32>}]} {
    %c0 = arith.constant 0 : index
    %c0_0 = arith.constant 0 : index
    %0 = vector.load %arg1[%c0, %c0_0] : memref<16x32xf32, #tpu.memory_space<vmem>>, vector<16x32xf32>
    %c0_1 = arith.constant 0 : index
    %c0_2 = arith.constant 0 : index
    %1 = vector.load %arg2[%c0_1, %c0_2] : memref<32x96xf32, #tpu.memory_space<vmem>>, vector<32x96xf32>
    %cst = arith.constant dense<0.000000e+00> : vector<16x96xf32>
    %2 = tpu.matmul %0, %1, %cst {dimension_numbers = #tpu.dot_dimension_numbers<[1], [0], [0], [1], [0, 0, 1, 1], [], []>} : vector<16x32xf32>, vector<32x96xf32>, vector<16x96xf32> -> vector<16x96xf32>
    %c0_3 = arith.constant 0 : index
    %c0_4 = arith.constant 0 : index
    %3 = vector.load %arg3[%c0_3, %c0_4] : memref<1x96xf32, #tpu.memory_space<vmem>>, vector<1x96xf32>
    %4 = vector.broadcast %3 : vector<1x96xf32> to vector<16x96xf32>
    %5 = arith.addf %2, %4 : vector<16x96xf32>
    %6 = vector.extract_strided_slice %5 {offsets = [0, 0], sizes = [8, 96], strides = [1, 1]} : vector<16x96xf32> to vector<8x96xf32>
    %7 = vector.extract_strided_slice %6 {offsets = [0, 0], sizes = [8, 8], strides = [1, 1]} : vector<8x96xf32> to vector<8x8xf32>
    %8 = vector.extract_strided_slice %6 {offsets = [0, 8], sizes = [8, 8], strides = [1, 1]} : vector<8x96xf32> to vector<8x8xf32>
    %9 = vector.extract_strided_slice %6 {offsets = [0, 16], sizes = [8, 8], strides = [1, 1]} : vector<8x96xf32> to vector<8x8xf32>
    %cst_5 = arith.constant dense<0.000000e+00> : vector<8x8xf32>
    %10 = tpu.matmul %7, %8, %cst_5 {dimension_numbers = #tpu.dot_dimension_numbers<[1], [1], [0], [0], [0, 0, 1, 0], [], []>} : vector<8x8xf32>, vector<8x8xf32>, vector<8x8xf32> -> vector<8x8xf32>
    %cst_6 = arith.constant 0.353553385 : f32
    %11 = vector.broadcast %cst_6 : f32 to vector<8x8xf32>
    %12 = arith.mulf %10, %11 : vector<8x8xf32>
    %cst_7 = arith.constant dense<0xFF800000> : vector<8xf32>
    %13 = vector.multi_reduction <maximumf>, %12, %cst_7 [1] : vector<8x8xf32> to vector<8xf32>
    %14 = vector.shape_cast %13 : vector<8xf32> to vector<8x1xf32>
    %15 = vector.broadcast %14 : vector<8x1xf32> to vector<8x8xf32>
    %16 = arith.subf %12, %15 : vector<8x8xf32>
    %17 = math.exp %16 : vector<8x8xf32>
    %cst_8 = arith.constant dense<0.000000e+00> : vector<8xf32>
    %18 = vector.multi_reduction <add>, %17, %cst_8 [1] : vector<8x8xf32> to vector<8xf32>
    %19 = vector.shape_cast %18 : vector<8xf32> to vector<8x1xf32>
    %20 = tpu.reciprocal %19 : vector<8x1xf32> -> vector<8x1xf32>
    %21 = vector.broadcast %20 : vector<8x1xf32> to vector<8x8xf32>
    %22 = arith.mulf %17, %21 : vector<8x8xf32>
    %cst_9 = arith.constant dense<0.000000e+00> : vector<8x8xf32>
    %23 = tpu.matmul %9, %22, %cst_9 {dimension_numbers = #tpu.dot_dimension_numbers<[0], [1], [1], [0], [0, 1, 1, 0], [], []>} : vector<8x8xf32>, vector<8x8xf32>, vector<8x8xf32> -> vector<8x8xf32>
    %24 = vector.extract_strided_slice %6 {offsets = [0, 24], sizes = [8, 8], strides = [1, 1]} : vector<8x96xf32> to vector<8x8xf32>
    %25 = vector.extract_strided_slice %6 {offsets = [0, 32], sizes = [8, 8], strides = [1, 1]} : vector<8x96xf32> to vector<8x8xf32>
    %26 = vector.extract_strided_slice %6 {offsets = [0, 40], sizes = [8, 8], strides = [1, 1]} : vector<8x96xf32> to vector<8x8xf32>
    %cst_10 = arith.constant dense<0.000000e+00> : vector<8x8xf32>
    %27 = tpu.matmul %24, %25, %cst_10 {dimension_numbers = #tpu.dot_dimension_numbers<[1], [1], [0], [0], [0, 0, 1, 0], [], []>} : vector<8x8xf32>, vector<8x8xf32>, vector<8x8xf32> -> vector<8x8xf32>
    %cst_11 = arith.constant 0.353553385 : f32
    %28 = vector.broadcast %cst_11 : f32 to vector<8x8xf32>
    %29 = arith.mulf %27, %28 : vector<8x8xf32>
    %cst_12 = arith.constant dense<0xFF800000> : vector<8xf32>
    %30 = vector.multi_reduction <maximumf>, %29, %cst_12 [1] : vector<8x8xf32> to vector<8xf32>
    %31 = vector.shape_cast %30 : vector<8xf32> to vector<8x1xf32>
    %32 = vector.broadcast %31 : vector<8x1xf32> to vector<8x8xf32>
    %33 = arith.subf %29, %32 : vector<8x8xf32>
    %34 = math.exp %33 : vector<8x8xf32>
    %cst_13 = arith.constant dense<0.000000e+00> : vector<8xf32>
    %35 = vector.multi_reduction <add>, %34, %cst_13 [1] : vector<8x8xf32> to vector<8xf32>
    %36 = vector.shape_cast %35 : vector<8xf32> to vector<8x1xf32>
    %37 = tpu.reciprocal %36 : vector<8x1xf32> -> vector<8x1xf32>
    %38 = vector.broadcast %37 : vector<8x1xf32> to vector<8x8xf32>
    %39 = arith.mulf %34, %38 : vector<8x8xf32>
    %cst_14 = arith.constant dense<0.000000e+00> : vector<8x8xf32>
    %40 = tpu.matmul %26, %39, %cst_14 {dimension_numbers = #tpu.dot_dimension_numbers<[0], [1], [1], [0], [0, 1, 1, 0], [], []>} : vector<8x8xf32>, vector<8x8xf32>, vector<8x8xf32> -> vector<8x8xf32>
    %41 = vector.extract_strided_slice %6 {offsets = [0, 48], sizes = [8, 8], strides = [1, 1]} : vector<8x96xf32> to vector<8x8xf32>
    %42 = vector.extract_strided_slice %6 {offsets = [0, 56], sizes = [8, 8], strides = [1, 1]} : vector<8x96xf32> to vector<8x8xf32>
    %43 = vector.extract_strided_slice %6 {offsets = [0, 64], sizes = [8, 8], strides = [1, 1]} : vector<8x96xf32> to vector<8x8xf32>
    %cst_15 = arith.constant dense<0.000000e+00> : vector<8x8xf32>
    %44 = tpu.matmul %41, %42, %cst_15 {dimension_numbers = #tpu.dot_dimension_numbers<[1], [1], [0], [0], [0, 0, 1, 0], [], []>} : vector<8x8xf32>, vector<8x8xf32>, vector<8x8xf32> -> vector<8x8xf32>
    %cst_16 = arith.constant 0.353553385 : f32
    %45 = vector.broadcast %cst_16 : f32 to vector<8x8xf32>
    %46 = arith.mulf %44, %45 : vector<8x8xf32>
    %cst_17 = arith.constant dense<0xFF800000> : vector<8xf32>
    %47 = vector.multi_reduction <maximumf>, %46, %cst_17 [1] : vector<8x8xf32> to vector<8xf32>
    %48 = vector.shape_cast %47 : vector<8xf32> to vector<8x1xf32>
    %49 = vector.broadcast %48 : vector<8x1xf32> to vector<8x8xf32>
    %50 = arith.subf %46, %49 : vector<8x8xf32>
    %51 = math.exp %50 : vector<8x8xf32>
    %cst_18 = arith.constant dense<0.000000e+00> : vector<8xf32>
    %52 = vector.multi_reduction <add>, %51, %cst_18 [1] : vector<8x8xf32> to vector<8xf32>
    %53 = vector.shape_cast %52 : vector<8xf32> to vector<8x1xf32>
    %54 = tpu.reciprocal %53 : vector<8x1xf32> -> vector<8x1xf32>
    %55 = vector.broadcast %54 : vector<8x1xf32> to vector<8x8xf32>
    %56 = arith.mulf %51, %55 : vector<8x8xf32>
    %cst_19 = arith.constant dense<0.000000e+00> : vector<8x8xf32>
    %57 = tpu.matmul %43, %56, %cst_19 {dimension_numbers = #tpu.dot_dimension_numbers<[0], [1], [1], [0], [0, 1, 1, 0], [], []>} : vector<8x8xf32>, vector<8x8xf32>, vector<8x8xf32> -> vector<8x8xf32>
    %58 = vector.extract_strided_slice %6 {offsets = [0, 72], sizes = [8, 8], strides = [1, 1]} : vector<8x96xf32> to vector<8x8xf32>
    %59 = vector.extract_strided_slice %6 {offsets = [0, 80], sizes = [8, 8], strides = [1, 1]} : vector<8x96xf32> to vector<8x8xf32>
    %60 = vector.extract_strided_slice %6 {offsets = [0, 88], sizes = [8, 8], strides = [1, 1]} : vector<8x96xf32> to vector<8x8xf32>
    %cst_20 = arith.constant dense<0.000000e+00> : vector<8x8xf32>
    %61 = tpu.matmul %58, %59, %cst_20 {dimension_numbers = #tpu.dot_dimension_numbers<[1], [1], [0], [0], [0, 0, 1, 0], [], []>} : vector<8x8xf32>, vector<8x8xf32>, vector<8x8xf32> -> vector<8x8xf32>
    %cst_21 = arith.constant 0.353553385 : f32
    %62 = vector.broadcast %cst_21 : f32 to vector<8x8xf32>
    %63 = arith.mulf %61, %62 : vector<8x8xf32>
    %cst_22 = arith.constant dense<0xFF800000> : vector<8xf32>
    %64 = vector.multi_reduction <maximumf>, %63, %cst_22 [1] : vector<8x8xf32> to vector<8xf32>
    %65 = vector.shape_cast %64 : vector<8xf32> to vector<8x1xf32>
    %66 = vector.broadcast %65 : vector<8x1xf32> to vector<8x8xf32>
    %67 = arith.subf %63, %66 : vector<8x8xf32>
    %68 = math.exp %67 : vector<8x8xf32>
    %cst_23 = arith.constant dense<0.000000e+00> : vector<8xf32>
    %69 = vector.multi_reduction <add>, %68, %cst_23 [1] : vector<8x8xf32> to vector<8xf32>
    %70 = vector.shape_cast %69 : vector<8xf32> to vector<8x1xf32>
    %71 = tpu.reciprocal %70 : vector<8x1xf32> -> vector<8x1xf32>
    %72 = vector.broadcast %71 : vector<8x1xf32> to vector<8x8xf32>
    %73 = arith.mulf %68, %72 : vector<8x8xf32>
    %cst_24 = arith.constant dense<0.000000e+00> : vector<8x8xf32>
    %74 = tpu.matmul %60, %73, %cst_24 {dimension_numbers = #tpu.dot_dimension_numbers<[0], [1], [1], [0], [0, 1, 1, 0], [], []>} : vector<8x8xf32>, vector<8x8xf32>, vector<8x8xf32> -> vector<8x8xf32>
    %75 = tpu.concatenate %23, %40, %57, %74 in 1 : vector<8x8xf32>, vector<8x8xf32>, vector<8x8xf32>, vector<8x8xf32> -> vector<8x32xf32>
    %76 = vector.extract_strided_slice %5 {offsets = [8, 0], sizes = [8, 96], strides = [1, 1]} : vector<16x96xf32> to vector<8x96xf32>
    %77 = vector.extract_strided_slice %76 {offsets = [0, 0], sizes = [8, 8], strides = [1, 1]} : vector<8x96xf32> to vector<8x8xf32>
    %78 = vector.extract_strided_slice %76 {offsets = [0, 8], sizes = [8, 8], strides = [1, 1]} : vector<8x96xf32> to vector<8x8xf32>
    %79 = vector.extract_strided_slice %76 {offsets = [0, 16], sizes = [8, 8], strides = [1, 1]} : vector<8x96xf32> to vector<8x8xf32>
    %cst_25 = arith.constant dense<0.000000e+00> : vector<8x8xf32>
    %80 = tpu.matmul %77, %78, %cst_25 {dimension_numbers = #tpu.dot_dimension_numbers<[1], [1], [0], [0], [0, 0, 1, 0], [], []>} : vector<8x8xf32>, vector<8x8xf32>, vector<8x8xf32> -> vector<8x8xf32>
    %cst_26 = arith.constant 0.353553385 : f32
    %81 = vector.broadcast %cst_26 : f32 to vector<8x8xf32>
    %82 = arith.mulf %80, %81 : vector<8x8xf32>
    %cst_27 = arith.constant dense<0xFF800000> : vector<8xf32>
    %83 = vector.multi_reduction <maximumf>, %82, %cst_27 [1] : vector<8x8xf32> to vector<8xf32>
    %84 = vector.shape_cast %83 : vector<8xf32> to vector<8x1xf32>
    %85 = vector.broadcast %84 : vector<8x1xf32> to vector<8x8xf32>
    %86 = arith.subf %82, %85 : vector<8x8xf32>
    %87 = math.exp %86 : vector<8x8xf32>
    %cst_28 = arith.constant dense<0.000000e+00> : vector<8xf32>
    %88 = vector.multi_reduction <add>, %87, %cst_28 [1] : vector<8x8xf32> to vector<8xf32>
    %89 = vector.shape_cast %88 : vector<8xf32> to vector<8x1xf32>
    %90 = tpu.reciprocal %89 : vector<8x1xf32> -> vector<8x1xf32>
    %91 = vector.broadcast %90 : vector<8x1xf32> to vector<8x8xf32>
    %92 = arith.mulf %87, %91 : vector<8x8xf32>
    %cst_29 = arith.constant dense<0.000000e+00> : vector<8x8xf32>
    %93 = tpu.matmul %79, %92, %cst_29 {dimension_numbers = #tpu.dot_dimension_numbers<[0], [1], [1], [0], [0, 1, 1, 0], [], []>} : vector<8x8xf32>, vector<8x8xf32>, vector<8x8xf32> -> vector<8x8xf32>
    %94 = vector.extract_strided_slice %76 {offsets = [0, 24], sizes = [8, 8], strides = [1, 1]} : vector<8x96xf32> to vector<8x8xf32>
    %95 = vector.extract_strided_slice %76 {offsets = [0, 32], sizes = [8, 8], strides = [1, 1]} : vector<8x96xf32> to vector<8x8xf32>
    %96 = vector.extract_strided_slice %76 {offsets = [0, 40], sizes = [8, 8], strides = [1, 1]} : vector<8x96xf32> to vector<8x8xf32>
    %cst_30 = arith.constant dense<0.000000e+00> : vector<8x8xf32>
    %97 = tpu.matmul %94, %95, %cst_30 {dimension_numbers = #tpu.dot_dimension_numbers<[1], [1], [0], [0], [0, 0, 1, 0], [], []>} : vector<8x8xf32>, vector<8x8xf32>, vector<8x8xf32> -> vector<8x8xf32>
    %cst_31 = arith.constant 0.353553385 : f32
    %98 = vector.broadcast %cst_31 : f32 to vector<8x8xf32>
    %99 = arith.mulf %97, %98 : vector<8x8xf32>
    %cst_32 = arith.constant dense<0xFF800000> : vector<8xf32>
    %100 = vector.multi_reduction <maximumf>, %99, %cst_32 [1] : vector<8x8xf32> to vector<8xf32>
    %101 = vector.shape_cast %100 : vector<8xf32> to vector<8x1xf32>
    %102 = vector.broadcast %101 : vector<8x1xf32> to vector<8x8xf32>
    %103 = arith.subf %99, %102 : vector<8x8xf32>
    %104 = math.exp %103 : vector<8x8xf32>
    %cst_33 = arith.constant dense<0.000000e+00> : vector<8xf32>
    %105 = vector.multi_reduction <add>, %104, %cst_33 [1] : vector<8x8xf32> to vector<8xf32>
    %106 = vector.shape_cast %105 : vector<8xf32> to vector<8x1xf32>
    %107 = tpu.reciprocal %106 : vector<8x1xf32> -> vector<8x1xf32>
    %108 = vector.broadcast %107 : vector<8x1xf32> to vector<8x8xf32>
    %109 = arith.mulf %104, %108 : vector<8x8xf32>
    %cst_34 = arith.constant dense<0.000000e+00> : vector<8x8xf32>
    %110 = tpu.matmul %96, %109, %cst_34 {dimension_numbers = #tpu.dot_dimension_numbers<[0], [1], [1], [0], [0, 1, 1, 0], [], []>} : vector<8x8xf32>, vector<8x8xf32>, vector<8x8xf32> -> vector<8x8xf32>
    %111 = vector.extract_strided_slice %76 {offsets = [0, 48], sizes = [8, 8], strides = [1, 1]} : vector<8x96xf32> to vector<8x8xf32>
    %112 = vector.extract_strided_slice %76 {offsets = [0, 56], sizes = [8, 8], strides = [1, 1]} : vector<8x96xf32> to vector<8x8xf32>
    %113 = vector.extract_strided_slice %76 {offsets = [0, 64], sizes = [8, 8], strides = [1, 1]} : vector<8x96xf32> to vector<8x8xf32>
    %cst_35 = arith.constant dense<0.000000e+00> : vector<8x8xf32>
    %114 = tpu.matmul %111, %112, %cst_35 {dimension_numbers = #tpu.dot_dimension_numbers<[1], [1], [0], [0], [0, 0, 1, 0], [], []>} : vector<8x8xf32>, vector<8x8xf32>, vector<8x8xf32> -> vector<8x8xf32>
    %cst_36 = arith.constant 0.353553385 : f32
    %115 = vector.broadcast %cst_36 : f32 to vector<8x8xf32>
    %116 = arith.mulf %114, %115 : vector<8x8xf32>
    %cst_37 = arith.constant dense<0xFF800000> : vector<8xf32>
    %117 = vector.multi_reduction <maximumf>, %116, %cst_37 [1] : vector<8x8xf32> to vector<8xf32>
    %118 = vector.shape_cast %117 : vector<8xf32> to vector<8x1xf32>
    %119 = vector.broadcast %118 : vector<8x1xf32> to vector<8x8xf32>
    %120 = arith.subf %116, %119 : vector<8x8xf32>
    %121 = math.exp %120 : vector<8x8xf32>
    %cst_38 = arith.constant dense<0.000000e+00> : vector<8xf32>
    %122 = vector.multi_reduction <add>, %121, %cst_38 [1] : vector<8x8xf32> to vector<8xf32>
    %123 = vector.shape_cast %122 : vector<8xf32> to vector<8x1xf32>
    %124 = tpu.reciprocal %123 : vector<8x1xf32> -> vector<8x1xf32>
    %125 = vector.broadcast %124 : vector<8x1xf32> to vector<8x8xf32>
    %126 = arith.mulf %121, %125 : vector<8x8xf32>
    %cst_39 = arith.constant dense<0.000000e+00> : vector<8x8xf32>
    %127 = tpu.matmul %113, %126, %cst_39 {dimension_numbers = #tpu.dot_dimension_numbers<[0], [1], [1], [0], [0, 1, 1, 0], [], []>} : vector<8x8xf32>, vector<8x8xf32>, vector<8x8xf32> -> vector<8x8xf32>
    %128 = vector.extract_strided_slice %76 {offsets = [0, 72], sizes = [8, 8], strides = [1, 1]} : vector<8x96xf32> to vector<8x8xf32>
    %129 = vector.extract_strided_slice %76 {offsets = [0, 80], sizes = [8, 8], strides = [1, 1]} : vector<8x96xf32> to vector<8x8xf32>
    %130 = vector.extract_strided_slice %76 {offsets = [0, 88], sizes = [8, 8], strides = [1, 1]} : vector<8x96xf32> to vector<8x8xf32>
    %cst_40 = arith.constant dense<0.000000e+00> : vector<8x8xf32>
    %131 = tpu.matmul %128, %129, %cst_40 {dimension_numbers = #tpu.dot_dimension_numbers<[1], [1], [0], [0], [0, 0, 1, 0], [], []>} : vector<8x8xf32>, vector<8x8xf32>, vector<8x8xf32> -> vector<8x8xf32>
    %cst_41 = arith.constant 0.353553385 : f32
    %132 = vector.broadcast %cst_41 : f32 to vector<8x8xf32>
    %133 = arith.mulf %131, %132 : vector<8x8xf32>
    %cst_42 = arith.constant dense<0xFF800000> : vector<8xf32>
    %134 = vector.multi_reduction <maximumf>, %133, %cst_42 [1] : vector<8x8xf32> to vector<8xf32>
    %135 = vector.shape_cast %134 : vector<8xf32> to vector<8x1xf32>
    %136 = vector.broadcast %135 : vector<8x1xf32> to vector<8x8xf32>
    %137 = arith.subf %133, %136 : vector<8x8xf32>
    %138 = math.exp %137 : vector<8x8xf32>
    %cst_43 = arith.constant dense<0.000000e+00> : vector<8xf32>
    %139 = vector.multi_reduction <add>, %138, %cst_43 [1] : vector<8x8xf32> to vector<8xf32>
    %140 = vector.shape_cast %139 : vector<8xf32> to vector<8x1xf32>
    %141 = tpu.reciprocal %140 : vector<8x1xf32> -> vector<8x1xf32>
    %142 = vector.broadcast %141 : vector<8x1xf32> to vector<8x8xf32>
    %143 = arith.mulf %138, %142 : vector<8x8xf32>
    %cst_44 = arith.constant dense<0.000000e+00> : vector<8x8xf32>
    %144 = tpu.matmul %130, %143, %cst_44 {dimension_numbers = #tpu.dot_dimension_numbers<[0], [1], [1], [0], [0, 1, 1, 0], [], []>} : vector<8x8xf32>, vector<8x8xf32>, vector<8x8xf32> -> vector<8x8xf32>
    %145 = tpu.concatenate %93, %110, %127, %144 in 1 : vector<8x8xf32>, vector<8x8xf32>, vector<8x8xf32>, vector<8x8xf32> -> vector<8x32xf32>
    %146 = tpu.concatenate %75, %145 in 0 : vector<8x32xf32>, vector<8x32xf32> -> vector<16x32xf32>
    %c0_45 = arith.constant 0 : index
    %c0_46 = arith.constant 0 : index
    %147 = vector.load %arg4[%c0_45, %c0_46] : memref<32x32xf32, #tpu.memory_space<vmem>>, vector<32x32xf32>
    %cst_47 = arith.constant dense<0.000000e+00> : vector<16x32xf32>
    %148 = tpu.matmul %146, %147, %cst_47 {dimension_numbers = #tpu.dot_dimension_numbers<[1], [0], [0], [1], [0, 0, 1, 1], [], []>} : vector<16x32xf32>, vector<32x32xf32>, vector<16x32xf32> -> vector<16x32xf32>
    %c0_48 = arith.constant 0 : index
    %c0_49 = arith.constant 0 : index
    %149 = vector.load %arg5[%c0_48, %c0_49] : memref<1x32xf32, #tpu.memory_space<vmem>>, vector<1x32xf32>
    %150 = vector.broadcast %149 : vector<1x32xf32> to vector<16x32xf32>
    %151 = arith.addf %148, %150 : vector<16x32xf32>
    %c0_50 = arith.constant 0 : index
    %c0_51 = arith.constant 0 : index
    %152 = vector.load %arg6[%c0_50, %c0_51] : memref<16x32xf32, #tpu.memory_space<vmem>>, vector<16x32xf32>
    tpu.vector_store %arg6[%c0_50, %c0_51], %151 {strides = array<i32>} : memref<16x32xf32, #tpu.memory_space<vmem>>, vector<16x32xf32>,
    return
  }
  func.func @transform_0(%arg0: i32) -> (i32, i32) {
    %c0_i32 = arith.constant 0 : i32
    %c0_i32_0 = arith.constant 0 : i32
    %c0_i32_1 = arith.constant 0 : i32
    return %c0_i32, %c0_i32_0 : i32, i32
  }
  func.func @transform_1(%arg0: i32) -> (i32, i32) {
    %c0_i32 = arith.constant 0 : i32
    %c0_i32_0 = arith.constant 0 : i32
    %c0_i32_1 = arith.constant 0 : i32
    return %c0_i32, %c0_i32_0 : i32, i32
  }
  func.func @transform_2(%arg0: i32) -> (i32, i32) {
    %c0_i32 = arith.constant 0 : i32
    %c0_i32_0 = arith.constant 0 : i32
    %c0_i32_1 = arith.constant 0 : i32
    return %c0_i32, %c0_i32_0 : i32, i32
  }
  func.func @transform_3(%arg0: i32) -> (i32, i32) {
    %c0_i32 = arith.constant 0 : i32
    %c0_i32_0 = arith.constant 0 : i32
    %c0_i32_1 = arith.constant 0 : i32
    return %c0_i32, %c0_i32_0 : i32, i32
  }
  func.func @transform_4(%arg0: i32) -> (i32, i32) {
    %c0_i32 = arith.constant 0 : i32
    %c0_i32_0 = arith.constant 0 : i32
    %c0_i32_1 = arith.constant 0 : i32
    return %c0_i32, %c0_i32_0 : i32, i32
  }
  func.func @transform_5(%arg0: i32) -> (i32, i32) {
    %c0_i32 = arith.constant 0 : i32
    %c0_i32_0 = arith.constant 0 : i32
    %c0_i32_1 = arith.constant 0 : i32
    return %c0_i32, %c0_i32_0 : i32, i32
  }
}

</mosaic_0001>

<llo_original>
// kernel: tpu_custom_call.1
$region0: #{tpu_custom_call.1}
  #allocation0 [shape = 'u32[]', space=smem, size = 0x4, offset = 0x4, fixed_abs, tag = 'smem constant byte address 0x4 - core index']
  #allocation1 [shape = 'u32[144,128]{1,0:T(1,128)}', space=vmem, size = 0x12000, scoped, tag = 'internal scratch']
  %s0 = inlined_call_operand.hbm [shape: f32[16,32], index: 0, kind: input, shape index: {}]
  %s1 = inlined_call_operand.hbm [shape: f32[32,96], index: 1, kind: input, shape index: {}]
  %s2 = inlined_call_operand.vmem [shape: f32[1,96], index: 2, kind: input, shape index: {}]
  %s3 = inlined_call_operand.hbm [shape: f32[32,32], index: 3, kind: input, shape index: {}]
  %s4 = inlined_call_operand.vmem [shape: f32[1,32], index: 4, kind: input, shape index: {}]
  %s5 = inlined_call_operand.hbm [shape: f32[16,32], index: 5, kind: output, shape index: {}]
  %s6 = sld [smem:[#allocation0]]
  $region42: #{tpu_custom_call.1} parent=0
    _
  %s8 = ssub.s32 1, %s6
  %s9 = scalar_select 0, %s8, %s6
  $region1: #{tpu_custom_call.1} parent=0
    #allocation2 [shape = 'u8[8192]{0}', space=vmem, size = 0x2000, scoped, tag = 'input window, operand 0, single buffered']
    #allocation3 [shape = 's32[1]{0}', space=sflag, size = 0x4, scoped, tag = 'scoped memory for tpu_custom_call.1']
    #allocation4 [shape = 's32[1]{0}', space=sflag, size = 0x4, scoped, tag = 'scoped memory for tpu_custom_call.1']
    #allocation5 [shape = 'u8[16384]{0}', space=vmem, size = 0x4000, scoped, tag = 'input window, operand 1, single buffered']
    #allocation6 [shape = 's32[1]{0}', space=sflag, size = 0x4, scoped, tag = 'scoped memory for tpu_custom_call.1']
    #allocation7 [shape = 'u8[16384]{0}', space=vmem, size = 0x4000, scoped, tag = 'input window, operand 3, single buffered']
    #allocation8 [shape = 'u8[8192]{0}', space=vmem, size = 0x2000, scoped, tag = 'output window, operand 0, single buffered']
    %10 = vsyncpa [#allocation3], 0
    %11 = vsyncpa [#allocation6], 0
    %12 = vsyncpa [#allocation4], 0
    // Predicated region
    $region2: #{tpu_custom_call.1} parent=1 // pred_check
      _
    $region3: #{tpu_custom_call.1} parent=1 // pred_check_branch
      %14 = sbr.rel (0) target = $region5
    $region4: #{tpu_custom_call.1} parent=1 // pred_region
      %s16 = ssub.s32 256, 256
      %17 = vsyncadd [#allocation3], %s16
      %s18 = sshll.u32 [#allocation2], 4
      %s19 = int_to_ptr.vmem [resolvable:$true] %s18
      %24 = dma.hbm_to_vmem [thread:$0]  %s0, 256, %s19, [#allocation3], 128, 128, 8
    $region5: #{tpu_custom_call.1} parent=1 // pred_fallthru
      _
    // Predicated region
    $region6: #{tpu_custom_call.1} parent=1 // pred_check
      _
    $region7: #{tpu_custom_call.1} parent=1 // pred_check_branch
      %26 = sbr.rel (0) target = $region9
    $region8: #{tpu_custom_call.1} parent=1 // pred_region
      %s28 = ssub.s32 512, 512
      %29 = vsyncadd [#allocation6], %s28
      %s30 = sshll.u32 [#allocation5], 4
      %s31 = int_to_ptr.vmem [resolvable:$true] %s30
      %36 = dma.hbm_to_vmem [thread:$0]  %s1, 512, %s31, [#allocation6], 128, 128, 8
    $region9: #{tpu_custom_call.1} parent=1 // pred_fallthru
      _
    // Predicated region
    $region10: #{tpu_custom_call.1} parent=1 // pred_check
      _
    $region11: #{tpu_custom_call.1} parent=1 // pred_check_branch
      %38 = sbr.rel (0) target = $region13
    $region12: #{tpu_custom_call.1} parent=1 // pred_region
      _
    $region13: #{tpu_custom_call.1} parent=1 // pred_fallthru
      _
    // Predicated region
    $region14: #{tpu_custom_call.1} parent=1 // pred_check
      _
    $region15: #{tpu_custom_call.1} parent=1 // pred_check_branch
      %40 = sbr.rel (0) target = $region17
    $region16: #{tpu_custom_call.1} parent=1 // pred_region
      %s42 = ssub.s32 512, 512
      %43 = vsyncadd [#allocation6], %s42
      %s44 = sshll.u32 [#allocation7], 4
      %s45 = int_to_ptr.vmem [resolvable:$true] %s44
      %50 = dma.hbm_to_vmem [thread:$0]  %s3, 512, %s45, [#allocation6], 128, 128, 8
    $region17: #{tpu_custom_call.1} parent=1 // pred_fallthru
      _
    // Predicated region
    $region18: #{tpu_custom_call.1} parent=1 // pred_check
      _
    $region19: #{tpu_custom_call.1} parent=1 // pred_check_branch
      %52 = sbr.rel (0) target = $region21
    $region20: #{tpu_custom_call.1} parent=1 // pred_region
      _
    $region21: #{tpu_custom_call.1} parent=1 // pred_fallthru
      _
    // Predicated region
    $region22: #{tpu_custom_call.1} parent=1 // pred_check
      _
    $region23: #{tpu_custom_call.1} parent=1 // pred_check_branch
      %54 = sbr.rel (0) target = $region25
    $region24: #{tpu_custom_call.1} parent=1 // pred_region
      %55 = dma.done [#allocation3], 256
    $region25: #{tpu_custom_call.1} parent=1 // pred_fallthru
      _
    // Predicated region
    $region26: #{tpu_custom_call.1} parent=1 // pred_check
      _
    $region27: #{tpu_custom_call.1} parent=1 // pred_check_branch
      %57 = sbr.rel (0) target = $region29
    $region28: #{tpu_custom_call.1} parent=1 // pred_region
      %58 = dma.done [#allocation6], 512
    $region29: #{tpu_custom_call.1} parent=1 // pred_fallthru
      _
    // Predicated region
    $region30: #{tpu_custom_call.1} parent=1 // pred_check
      _
    $region31: #{tpu_custom_call.1} parent=1 // pred_check_branch
      %60 = sbr.rel (0) target = $region33
    $region32: #{tpu_custom_call.1} parent=1 // pred_region
      %61 = dma.done [#allocation6], 512
    $region33: #{tpu_custom_call.1} parent=1 // pred_fallthru
      _
    %v62 = vld [vmem:[#allocation2] sm:$0xff]
    %v63 = vld [vmem:[#allocation2 + $0x8] sm:$0xff]
    %v64 = vld [vmem:[#allocation5] sm:$0xff]
    %v65 = vld [vmem:[#allocation5 + $0x8] sm:$0xff]
    %v66 = vld [vmem:[#allocation5 + $0x10] sm:$0xff]
    %v67 = vld [vmem:[#allocation5 + $0x18] sm:$0xff]
    %v68 = vld [vmem:[%s2] sm:$0x1]
    %v70 = vlaneseq
    %v71 = vshrl.u32 %v70, 7
    %v72 = vsub.s32 0, %v71
    %v73 = vrot.slane %v68, %v72
    %vm75 = vcmask 261120
    %v77 = vsel %vm75, %v62, 0
    %v80 = vsel %vm75, %v63, 0
    %82 = vmatprep.subr.mxu0 0.0
    %83 = vmatpush1.msra.mxu0 0.0
    %84 = vmatprep.subr.mxu0 0.0
    %85 = vmatpush1.msra.mxu0 0.0
    %86 = vmatprep.subr.mxu0 0.0
    %87 = vmatpush1.msra.mxu0 0.0
    %88 = vmatprep.subr.mxu0 0.0
    %89 = vmatpush1.msra.mxu0 0.0
    %90 = vmatprep.subr.mxu0 0.0
    %91 = vmatpush1.msra.mxu0 0.0
    %92 = vmatprep.subr.mxu0 0.0
    %93 = vmatpush1.msra.mxu0 0.0
    %94 = vmatprep.subr.mxu0 0.0
    %95 = vmatpush1.msra.mxu0 0.0
    %96 = vmatprep.subr.mxu0 0.0
    %97 = vmatpush1.msra.mxu0 0.0
    %98 = vmatprep.subr.mxu0 0.0
    %99 = vmatpush1.msra.mxu0 0.0
    %100 = vmatprep.subr.mxu0 0.0
    %101 = vmatpush1.msra.mxu0 0.0
    %102 = vmatprep.subr.mxu0 0.0
    %103 = vmatpush1.msra.mxu0 0.0
    %104 = vmatprep.subr.mxu0 0.0
    %105 = vmatpush1.msra.mxu0 0.0
    %106 = vmatprep.subr.mxu0 0.0
    %107 = vmatpush1.msra.mxu0 %v67
    %108 = vmatprep.subr.mxu0 0.0
    %109 = vmatpush1.msra.mxu0 %v66
    %110 = vmatprep.subr.mxu0 0.0
    %111 = vmatpush1.msra.mxu0 %v65
    %112 = vmatprep.subr.mxu0 0.0
    %113 = vmatpush1.msra.mxu0 %v64
    %114 = vmatprep.subr.mxu0 0.0
    %115 = vmatpush2.msra.mxu0 0.0
    %116 = vmatprep.subr.mxu0 0.0
    %117 = vmatpush2.msra.mxu0 0.0
    %118 = vmatprep.subr.mxu0 0.0
    %119 = vmatpush2.msra.mxu0 0.0
    %120 = vmatprep.subr.mxu0 0.0
    %121 = vmatpush2.msra.mxu0 0.0
    %122 = vmatprep.subr.mxu0 0.0
    %123 = vmatpush2.msra.mxu0 0.0
    %124 = vmatprep.subr.mxu0 0.0
    %125 = vmatpush2.msra.mxu0 0.0
    %126 = vmatprep.subr.mxu0 0.0
    %127 = vmatpush2.msra.mxu0 0.0
    %128 = vmatprep.subr.mxu0 0.0
    %129 = vmatpush2.msra.mxu0 0.0
    %130 = vmatprep.subr.mxu0 0.0
    %131 = vmatpush2.msra.mxu0 0.0
    %132 = vmatprep.subr.mxu0 0.0
    %133 = vmatpush2.msra.mxu0 0.0
    %134 = vmatprep.subr.mxu0 0.0
    %135 = vmatpush2.msra.mxu0 0.0
    %136 = vmatprep.subr.mxu0 0.0
    %137 = vmatpush2.msra.mxu0 0.0
    %138 = vmatprep.subr.mxu0 0.0
    %139 = vmatpush2.msra.mxu0 0.0
    %140 = vmatprep.subr.mxu0 0.0
    %141 = vmatpush2.msra.mxu0 0.0
    %142 = vmatprep.subr.mxu0 0.0
    %143 = vmatpush2.msra.mxu0 0.0
    %144 = vmatprep.subr.mxu0 0.0
    %145 = vmatpush2.msra.mxu0 0.0
    %146 = vmatprep.mubr.f32.mxu0 0.0
    %147 = vmatmul.mubr.f32.gmra.mxu0 %v77
    %v148 = vpop.f32.mrf.mxu0
    %v149 = vadd.f32 %v73, %v148
    %v150 = vpop.f32.mrf.mxu0
    %151 = vmatprep.mubr.f32.mxu0 0.0
    %152 = vmatmul.mubr.f32.gmra.mxu0 %v80
    %v153 = vpop.f32.mrf.mxu0
    %v154 = vadd.f32 %v73, %v153
    %v155 = vpop.f32.mrf.mxu0
    %156 = vdwg.mxu0
    %158 = vrot.lane.b32.xlu0 %v149, 120
    %v159 = vpop.permute.xlu0 %158
    %vm160 = vcmask 64512
    %v161 = vsel %vm160, %v149, 0
    %v163 = vsel %vm160, %v159, 0
    %165 = vmatprep.subr.mxu0 0.0
    %166 = vmatpush1.xpose.msra.mxu0 0.0
    %167 = vmatprep.subr.mxu0 0.0
    %168 = vmatpush1.xpose.msra.mxu0 0.0
    %169 = vmatprep.subr.mxu0 0.0
    %170 = vmatpush1.xpose.msra.mxu0 0.0
    %171 = vmatprep.subr.mxu0 0.0
    %172 = vmatpush1.xpose.msra.mxu0 0.0
    %173 = vmatprep.subr.mxu0 0.0
    %174 = vmatpush1.xpose.msra.mxu0 0.0
    %175 = vmatprep.subr.mxu0 0.0
    %176 = vmatpush1.xpose.msra.mxu0 0.0
    %177 = vmatprep.subr.mxu0 0.0
    %178 = vmatpush1.xpose.msra.mxu0 0.0
    %179 = vmatprep.subr.mxu0 0.0
    %180 = vmatpush1.xpose.msra.mxu0 0.0
    %181 = vmatprep.subr.mxu0 0.0
    %182 = vmatpush1.xpose.msra.mxu0 0.0
    %183 = vmatprep.subr.mxu0 0.0
    %184 = vmatpush1.xpose.msra.mxu0 0.0
    %185 = vmatprep.subr.mxu0 0.0
    %186 = vmatpush1.xpose.msra.mxu0 0.0
    %187 = vmatprep.subr.mxu0 0.0
    %188 = vmatpush1.xpose.msra.mxu0 0.0
    %189 = vmatprep.subr.mxu0 0.0
    %190 = vmatpush1.xpose.msra.mxu0 0.0
    %191 = vmatprep.subr.mxu0 0.0
    %192 = vmatpush1.xpose.msra.mxu0 0.0
    %193 = vmatprep.subr.mxu0 0.0
    %194 = vmatpush1.xpose.msra.mxu0 0.0
    %195 = vmatprep.subr.mxu0 0.0
    %196 = vmatpush1.xpose.msra.mxu0 %v163
    %197 = vmatprep.subr.mxu0 0.0
    %198 = vmatpush2.xpose.msra.mxu0 0.0
    %199 = vmatprep.subr.mxu0 0.0
    %200 = vmatpush2.xpose.msra.mxu0 0.0
    %201 = vmatprep.subr.mxu0 0.0
    %202 = vmatpush2.xpose.msra.mxu0 0.0
    %203 = vmatprep.subr.mxu0 0.0
    %204 = vmatpush2.xpose.msra.mxu0 0.0
    %205 = vmatprep.subr.mxu0 0.0
    %206 = vmatpush2.xpose.msra.mxu0 0.0
    %207 = vmatprep.subr.mxu0 0.0
    %208 = vmatpush2.xpose.msra.mxu0 0.0
    %209 = vmatprep.subr.mxu0 0.0
    %210 = vmatpush2.xpose.msra.mxu0 0.0
    %211 = vmatprep.subr.mxu0 0.0
    %212 = vmatpush2.xpose.msra.mxu0 0.0
    %213 = vmatprep.subr.mxu0 0.0
    %214 = vmatpush2.xpose.msra.mxu0 0.0
    %215 = vmatprep.subr.mxu0 0.0
    %216 = vmatpush2.xpose.msra.mxu0 0.0
    %217 = vmatprep.subr.mxu0 0.0
    %218 = vmatpush2.xpose.msra.mxu0 0.0
    %219 = vmatprep.subr.mxu0 0.0
    %220 = vmatpush2.xpose.msra.mxu0 0.0
    %221 = vmatprep.subr.mxu0 0.0
    %222 = vmatpush2.xpose.msra.mxu0 0.0
    %223 = vmatprep.subr.mxu0 0.0
    %224 = vmatpush2.xpose.msra.mxu0 0.0
    %225 = vmatprep.subr.mxu0 0.0
    %226 = vmatpush2.xpose.msra.mxu0 0.0
    %227 = vmatprep.subr.mxu0 0.0
    %228 = vmatpush2.xpose.msra.mxu0 0.0
    %229 = vmatprep.mubr.f32.mxu0 0.0
    %230 = vmatmul.mubr.f32.gmra.mxu0 %v161
    %v231 = vpop.f32.mrf.mxu0
    %v232 = vadd.f32 0.0, %v231
    %v233 = vpop.f32.mrf.mxu0
    %234 = vdwg.mxu0
    %v235 = vmul.f32 %v232, 0.35355338
    %v236 = vsel %vm160, %v235, -inf
    %237 = vmax.xlane.f32.xlu0 %v236
    %v238 = vpop.xlane.xlu0 %237
    %v239 = vsub.f32 %v235, %v238
    %v240 = vmul.f32 %v239, 1.442695
    %v241 = vpow.pop %v240
    %v242 = vsel %vm160, %v241, 0.0
    %243 = vadd.xlane.f32.xlu0 %v242
    %v244 = vpop.xlane.xlu0 %243
    %v245 = vrcp.pop %v244
    %v246 = vmul.f32 %v241, %v245
    %247 = vrot.lane.b32.xlu0 %v149, 112
    %v248 = vpop.permute.xlu0 %247
    %250 = vxpose.xlu0.b32.start [1/16] %v248, 128
    %251 = vxpose.xlu0.b32.cont [2/16] 0.0, 128
    %252 = vxpose.xlu0.b32.cont [3/16] 0.0, 128
    %253 = vxpose.xlu0.b32.cont [4/16] 0.0, 128
    %254 = vxpose.xlu0.b32.cont [5/16] 0.0, 128
    %255 = vxpose.xlu0.b32.cont [6/16] 0.0, 128
    %256 = vxpose.xlu0.b32.cont [7/16] 0.0, 128
    %257 = vxpose.xlu0.b32.cont [8/16] 0.0, 128
    %258 = vxpose.xlu0.b32.cont [9/16] 0.0, 128
    %259 = vxpose.xlu0.b32.cont [10/16] 0.0, 128
    %260 = vxpose.xlu0.b32.cont [11/16] 0.0, 128
    %261 = vxpose.xlu0.b32.cont [12/16] 0.0, 128
    %262 = vxpose.xlu0.b32.cont [13/16] 0.0, 128
    %263 = vxpose.xlu0.b32.cont [14/16] 0.0, 128
    %264 = vxpose.xlu0.b32.cont [15/16] 0.0, 128
    %265 = vxpose.xlu0.b32.end [16/16] 0.0, 128
    %v266 = vpop.trf.xlu0
    %v267 = vpop.trf.xlu0
    %v268 = vpop.trf.xlu0
    %v269 = vpop.trf.xlu0
    %v270 = vpop.trf.xlu0
    %v271 = vpop.trf.xlu0
    %v272 = vpop.trf.xlu0
    %v273 = vpop.trf.xlu0
    %v274 = vpop.trf.xlu0
    %v275 = vpop.trf.xlu0
    %v276 = vpop.trf.xlu0
    %v277 = vpop.trf.xlu0
    %v278 = vpop.trf.xlu0
    %v279 = vpop.trf.xlu0
    %v280 = vpop.trf.xlu0
    %v281 = vpop.trf.xlu0
    %v283 = vsel %vm160, %v266, 0
    %v286 = vsel %vm160, %v246, 0
    %288 = vmatprep.subr.mxu0 0.0
    %289 = vmatpush1.xpose.msra.mxu0 0.0
    %290 = vmatprep.subr.mxu0 0.0
    %291 = vmatpush1.xpose.msra.mxu0 0.0
    %292 = vmatprep.subr.mxu0 0.0
    %293 = vmatpush1.xpose.msra.mxu0 0.0
    %294 = vmatprep.subr.mxu0 0.0
    %295 = vmatpush1.xpose.msra.mxu0 0.0
    %296 = vmatprep.subr.mxu0 0.0
    %297 = vmatpush1.xpose.msra.mxu0 0.0
    %298 = vmatprep.subr.mxu0 0.0
    %299 = vmatpush1.xpose.msra.mxu0 0.0
    %300 = vmatprep.subr.mxu0 0.0
    %301 = vmatpush1.xpose.msra.mxu0 0.0
    %302 = vmatprep.subr.mxu0 0.0
    %303 = vmatpush1.xpose.msra.mxu0 0.0
    %304 = vmatprep.subr.mxu0 0.0
    %305 = vmatpush1.xpose.msra.mxu0 0.0
    %306 = vmatprep.subr.mxu0 0.0
    %307 = vmatpush1.xpose.msra.mxu0 0.0
    %308 = vmatprep.subr.mxu0 0.0
    %309 = vmatpush1.xpose.msra.mxu0 0.0
    %310 = vmatprep.subr.mxu0 0.0
    %311 = vmatpush1.xpose.msra.mxu0 0.0
    %312 = vmatprep.subr.mxu0 0.0
    %313 = vmatpush1.xpose.msra.mxu0 0.0
    %314 = vmatprep.subr.mxu0 0.0
    %315 = vmatpush1.xpose.msra.mxu0 0.0
    %316 = vmatprep.subr.mxu0 0.0
    %317 = vmatpush1.xpose.msra.mxu0 0.0
    %318 = vmatprep.subr.mxu0 0.0
    %319 = vmatpush1.xpose.msra.mxu0 %v286
    %320 = vmatprep.subr.mxu0 0.0
    %321 = vmatpush2.xpose.msra.mxu0 0.0
    %322 = vmatprep.subr.mxu0 0.0
    %323 = vmatpush2.xpose.msra.mxu0 0.0
    %324 = vmatprep.subr.mxu0 0.0
    %325 = vmatpush2.xpose.msra.mxu0 0.0
    %326 = vmatprep.subr.mxu0 0.0
    %327 = vmatpush2.xpose.msra.mxu0 0.0
    %328 = vmatprep.subr.mxu0 0.0
    %329 = vmatpush2.xpose.msra.mxu0 0.0
    %330 = vmatprep.subr.mxu0 0.0
    %331 = vmatpush2.xpose.msra.mxu0 0.0
    %332 = vmatprep.subr.mxu0 0.0
    %333 = vmatpush2.xpose.msra.mxu0 0.0
    %334 = vmatprep.subr.mxu0 0.0
    %335 = vmatpush2.xpose.msra.mxu0 0.0
    %336 = vmatprep.subr.mxu0 0.0
    %337 = vmatpush2.xpose.msra.mxu0 0.0
    %338 = vmatprep.subr.mxu0 0.0
    %339 = vmatpush2.xpose.msra.mxu0 0.0
    %340 = vmatprep.subr.mxu0 0.0
    %341 = vmatpush2.xpose.msra.mxu0 0.0
    %342 = vmatprep.subr.mxu0 0.0
    %343 = vmatpush2.xpose.msra.mxu0 0.0
    %344 = vmatprep.subr.mxu0 0.0
    %345 = vmatpush2.xpose.msra.mxu0 0.0
    %346 = vmatprep.subr.mxu0 0.0
    %347 = vmatpush2.xpose.msra.mxu0 0.0
    %348 = vmatprep.subr.mxu0 0.0
    %349 = vmatpush2.xpose.msra.mxu0 0.0
    %350 = vmatprep.subr.mxu0 0.0
    %351 = vmatpush2.xpose.msra.mxu0 0.0
    %352 = vmatprep.mubr.f32.mxu0 0.0
    %353 = vmatmul.mubr.f32.gmra.mxu0 %v283
    %v354 = vpop.f32.mrf.mxu0
    %v355 = vadd.f32 0.0, %v354
    %v356 = vpop.f32.mrf.mxu0
    %357 = vdwg.mxu0
    %358 = vrot.lane.b32.xlu0 %v149, 104
    %v359 = vpop.permute.xlu0 %358
    %360 = vrot.lane.b32.xlu0 %v149, 96
    %v361 = vpop.permute.xlu0 %360
    %v362 = vsel %vm160, %v359, 0
    %v364 = vsel %vm160, %v361, 0
    %366 = vmatprep.subr.mxu0 0.0
    %367 = vmatpush1.xpose.msra.mxu0 0.0
    %368 = vmatprep.subr.mxu0 0.0
    %369 = vmatpush1.xpose.msra.mxu0 0.0
    %370 = vmatprep.subr.mxu0 0.0
    %371 = vmatpush1.xpose.msra.mxu0 0.0
    %372 = vmatprep.subr.mxu0 0.0
    %373 = vmatpush1.xpose.msra.mxu0 0.0
    %374 = vmatprep.subr.mxu0 0.0
    %375 = vmatpush1.xpose.msra.mxu0 0.0
    %376 = vmatprep.subr.mxu0 0.0
    %377 = vmatpush1.xpose.msra.mxu0 0.0
    %378 = vmatprep.subr.mxu0 0.0
    %379 = vmatpush1.xpose.msra.mxu0 0.0
    %380 = vmatprep.subr.mxu0 0.0
    %381 = vmatpush1.xpose.msra.mxu0 0.0
    %382 = vmatprep.subr.mxu0 0.0
    %383 = vmatpush1.xpose.msra.mxu0 0.0
    %384 = vmatprep.subr.mxu0 0.0
    %385 = vmatpush1.xpose.msra.mxu0 0.0
    %386 = vmatprep.subr.mxu0 0.0
    %387 = vmatpush1.xpose.msra.mxu0 0.0
    %388 = vmatprep.subr.mxu0 0.0
    %389 = vmatpush1.xpose.msra.mxu0 0.0
    %390 = vmatprep.subr.mxu0 0.0
    %391 = vmatpush1.xpose.msra.mxu0 0.0
    %392 = vmatprep.subr.mxu0 0.0
    %393 = vmatpush1.xpose.msra.mxu0 0.0
    %394 = vmatprep.subr.mxu0 0.0
    %395 = vmatpush1.xpose.msra.mxu0 0.0
    %396 = vmatprep.subr.mxu0 0.0
    %397 = vmatpush1.xpose.msra.mxu0 %v364
    %398 = vmatprep.subr.mxu0 0.0
    %399 = vmatpush2.xpose.msra.mxu0 0.0
    %400 = vmatprep.subr.mxu0 0.0
    %401 = vmatpush2.xpose.msra.mxu0 0.0
    %402 = vmatprep.subr.mxu0 0.0
    %403 = vmatpush2.xpose.msra.mxu0 0.0
    %404 = vmatprep.subr.mxu0 0.0
    %405 = vmatpush2.xpose.msra.mxu0 0.0
    %406 = vmatprep.subr.mxu0 0.0
    %407 = vmatpush2.xpose.msra.mxu0 0.0
    %408 = vmatprep.subr.mxu0 0.0
    %409 = vmatpush2.xpose.msra.mxu0 0.0
    %410 = vmatprep.subr.mxu0 0.0
    %411 = vmatpush2.xpose.msra.mxu0 0.0
    %412 = vmatprep.subr.mxu0 0.0
    %413 = vmatpush2.xpose.msra.mxu0 0.0
    %414 = vmatprep.subr.mxu0 0.0
    %415 = vmatpush2.xpose.msra.mxu0 0.0
    %416 = vmatprep.subr.mxu0 0.0
    %417 = vmatpush2.xpose.msra.mxu0 0.0
    %418 = vmatprep.subr.mxu0 0.0
    %419 = vmatpush2.xpose.msra.mxu0 0.0
    %420 = vmatprep.subr.mxu0 0.0
    %421 = vmatpush2.xpose.msra.mxu0 0.0
    %422 = vmatprep.subr.mxu0 0.0
    %423 = vmatpush2.xpose.msra.mxu0 0.0
    %424 = vmatprep.subr.mxu0 0.0
    %425 = vmatpush2.xpose.msra.mxu0 0.0
    %426 = vmatprep.subr.mxu0 0.0
    %427 = vmatpush2.xpose.msra.mxu0 0.0
    %428 = vmatprep.subr.mxu0 0.0
    %429 = vmatpush2.xpose.msra.mxu0 0.0
    %430 = vmatprep.mubr.f32.mxu0 0.0
    %431 = vmatmul.mubr.f32.gmra.mxu0 %v362
    %v432 = vpop.f32.mrf.mxu0
    %v433 = vadd.f32 0.0, %v432
    %v434 = vpop.f32.mrf.mxu0
    %435 = vdwg.mxu0
    %v436 = vmul.f32 %v433, 0.35355338
    %v437 = vsel %vm160, %v436, -inf
    %438 = vmax.xlane.f32.xlu0 %v437
    %v439 = vpop.xlane.xlu0 %438
    %v440 = vsub.f32 %v436, %v439
    %v441 = vmul.f32 %v440, 1.442695
    %v442 = vpow.pop %v441
    %v443 = vsel %vm160, %v442, 0.0
    %444 = vadd.xlane.f32.xlu0 %v443
    %v445 = vpop.xlane.xlu0 %444
    %v446 = vrcp.pop %v445
    %v447 = vmul.f32 %v442, %v446
    %448 = vrot.lane.b32.xlu0 %v149, 88
    %v449 = vpop.permute.xlu0 %448
    %451 = vxpose.xlu0.b32.start [1/16] %v449, 128
    %452 = vxpose.xlu0.b32.cont [2/16] 0.0, 128
    %453 = vxpose.xlu0.b32.cont [3/16] 0.0, 128
    %454 = vxpose.xlu0.b32.cont [4/16] 0.0, 128
    %455 = vxpose.xlu0.b32.cont [5/16] 0.0, 128
    %456 = vxpose.xlu0.b32.cont [6/16] 0.0, 128
    %457 = vxpose.xlu0.b32.cont [7/16] 0.0, 128
    %458 = vxpose.xlu0.b32.cont [8/16] 0.0, 128
    %459 = vxpose.xlu0.b32.cont [9/16] 0.0, 128
    %460 = vxpose.xlu0.b32.cont [10/16] 0.0, 128
    %461 = vxpose.xlu0.b32.cont [11/16] 0.0, 128
    %462 = vxpose.xlu0.b32.cont [12/16] 0.0, 128
    %463 = vxpose.xlu0.b32.cont [13/16] 0.0, 128
    %464 = vxpose.xlu0.b32.cont [14/16] 0.0, 128
    %465 = vxpose.xlu0.b32.cont [15/16] 0.0, 128
    %466 = vxpose.xlu0.b32.end [16/16] 0.0, 128
    %v467 = vpop.trf.xlu0
    %v468 = vpop.trf.xlu0
    %v469 = vpop.trf.xlu0
    %v470 = vpop.trf.xlu0
    %v471 = vpop.trf.xlu0
    %v472 = vpop.trf.xlu0
    %v473 = vpop.trf.xlu0
    %v474 = vpop.trf.xlu0
    %v475 = vpop.trf.xlu0
    %v476 = vpop.trf.xlu0
    %v477 = vpop.trf.xlu0
    %v478 = vpop.trf.xlu0
    %v479 = vpop.trf.xlu0
    %v480 = vpop.trf.xlu0
    %v481 = vpop.trf.xlu0
    %v482 = vpop.trf.xlu0
    %v484 = vsel %vm160, %v467, 0
    %v487 = vsel %vm160, %v447, 0
    %489 = vmatprep.subr.mxu0 0.0
    %490 = vmatpush1.xpose.msra.mxu0 0.0
    %491 = vmatprep.subr.mxu0 0.0
    %492 = vmatpush1.xpose.msra.mxu0 0.0
    %493 = vmatprep.subr.mxu0 0.0
    %494 = vmatpush1.xpose.msra.mxu0 0.0
    %495 = vmatprep.subr.mxu0 0.0
    %496 = vmatpush1.xpose.msra.mxu0 0.0
    %497 = vmatprep.subr.mxu0 0.0
    %498 = vmatpush1.xpose.msra.mxu0 0.0
    %499 = vmatprep.subr.mxu0 0.0
    %500 = vmatpush1.xpose.msra.mxu0 0.0
    %501 = vmatprep.subr.mxu0 0.0
    %502 = vmatpush1.xpose.msra.mxu0 0.0
    %503 = vmatprep.subr.mxu0 0.0
    %504 = vmatpush1.xpose.msra.mxu0 0.0
    %505 = vmatprep.subr.mxu0 0.0
    %506 = vmatpush1.xpose.msra.mxu0 0.0
    %507 = vmatprep.subr.mxu0 0.0
    %508 = vmatpush1.xpose.msra.mxu0 0.0
    %509 = vmatprep.subr.mxu0 0.0
    %510 = vmatpush1.xpose.msra.mxu0 0.0
    %511 = vmatprep.subr.mxu0 0.0
    %512 = vmatpush1.xpose.msra.mxu0 0.0
    %513 = vmatprep.subr.mxu0 0.0
    %514 = vmatpush1.xpose.msra.mxu0 0.0
    %515 = vmatprep.subr.mxu0 0.0
    %516 = vmatpush1.xpose.msra.mxu0 0.0
    %517 = vmatprep.subr.mxu0 0.0
    %518 = vmatpush1.xpose.msra.mxu0 0.0
    %519 = vmatprep.subr.mxu0 0.0
    %520 = vmatpush1.xpose.msra.mxu0 %v487
    %521 = vmatprep.subr.mxu0 0.0
    %522 = vmatpush2.xpose.msra.mxu0 0.0
    %523 = vmatprep.subr.mxu0 0.0
    %524 = vmatpush2.xpose.msra.mxu0 0.0
    %525 = vmatprep.subr.mxu0 0.0
    %526 = vmatpush2.xpose.msra.mxu0 0.0
    %527 = vmatprep.subr.mxu0 0.0
    %528 = vmatpush2.xpose.msra.mxu0 0.0
    %529 = vmatprep.subr.mxu0 0.0
    %530 = vmatpush2.xpose.msra.mxu0 0.0
    %531 = vmatprep.subr.mxu0 0.0
    %532 = vmatpush2.xpose.msra.mxu0 0.0
    %533 = vmatprep.subr.mxu0 0.0
    %534 = vmatpush2.xpose.msra.mxu0 0.0
    %535 = vmatprep.subr.mxu0 0.0
    %536 = vmatpush2.xpose.msra.mxu0 0.0
    %537 = vmatprep.subr.mxu0 0.0
    %538 = vmatpush2.xpose.msra.mxu0 0.0
    %539 = vmatprep.subr.mxu0 0.0
    %540 = vmatpush2.xpose.msra.mxu0 0.0
    %541 = vmatprep.subr.mxu0 0.0
    %542 = vmatpush2.xpose.msra.mxu0 0.0
    %543 = vmatprep.subr.mxu0 0.0
    %544 = vmatpush2.xpose.msra.mxu0 0.0
    %545 = vmatprep.subr.mxu0 0.0
    %546 = vmatpush2.xpose.msra.mxu0 0.0
    %547 = vmatprep.subr.mxu0 0.0
    %548 = vmatpush2.xpose.msra.mxu0 0.0
    %549 = vmatprep.subr.mxu0 0.0
    %550 = vmatpush2.xpose.msra.mxu0 0.0
    %551 = vmatprep.subr.mxu0 0.0
    %552 = vmatpush2.xpose.msra.mxu0 0.0
    %553 = vmatprep.mubr.f32.mxu0 0.0
    %554 = vmatmul.mubr.f32.gmra.mxu0 %v484
    %v555 = vpop.f32.mrf.mxu0
    %v556 = vadd.f32 0.0, %v555
    %v557 = vpop.f32.mrf.mxu0
    %558 = vdwg.mxu0
    %559 = vrot.lane.b32.xlu0 %v149, 80
    %v560 = vpop.permute.xlu0 %559
    %561 = vrot.lane.b32.xlu0 %v149, 72
    %v562 = vpop.permute.xlu0 %561
    %v563 = vsel %vm160, %v560, 0
    %v565 = vsel %vm160, %v562, 0
    %567 = vmatprep.subr.mxu0 0.0
    %568 = vmatpush1.xpose.msra.mxu0 0.0
    %569 = vmatprep.subr.mxu0 0.0
    %570 = vmatpush1.xpose.msra.mxu0 0.0
    %571 = vmatprep.subr.mxu0 0.0
    %572 = vmatpush1.xpose.msra.mxu0 0.0
    %573 = vmatprep.subr.mxu0 0.0
    %574 = vmatpush1.xpose.msra.mxu0 0.0
    %575 = vmatprep.subr.mxu0 0.0
    %576 = vmatpush1.xpose.msra.mxu0 0.0
    %577 = vmatprep.subr.mxu0 0.0
    %578 = vmatpush1.xpose.msra.mxu0 0.0
    %579 = vmatprep.subr.mxu0 0.0
    %580 = vmatpush1.xpose.msra.mxu0 0.0
    %581 = vmatprep.subr.mxu0 0.0
    %582 = vmatpush1.xpose.msra.mxu0 0.0
    %583 = vmatprep.subr.mxu0 0.0
    %584 = vmatpush1.xpose.msra.mxu0 0.0
    %585 = vmatprep.subr.mxu0 0.0
    %586 = vmatpush1.xpose.msra.mxu0 0.0
    %587 = vmatprep.subr.mxu0 0.0
    %588 = vmatpush1.xpose.msra.mxu0 0.0
    %589 = vmatprep.subr.mxu0 0.0
    %590 = vmatpush1.xpose.msra.mxu0 0.0
    %591 = vmatprep.subr.mxu0 0.0
    %592 = vmatpush1.xpose.msra.mxu0 0.0
    %593 = vmatprep.subr.mxu0 0.0
    %594 = vmatpush1.xpose.msra.mxu0 0.0
    %595 = vmatprep.subr.mxu0 0.0
    %596 = vmatpush1.xpose.msra.mxu0 0.0
    %597 = vmatprep.subr.mxu0 0.0
    %598 = vmatpush1.xpose.msra.mxu0 %v565
    %599 = vmatprep.subr.mxu0 0.0
    %600 = vmatpush2.xpose.msra.mxu0 0.0
    %601 = vmatprep.subr.mxu0 0.0
    %602 = vmatpush2.xpose.msra.mxu0 0.0
    %603 = vmatprep.subr.mxu0 0.0
    %604 = vmatpush2.xpose.msra.mxu0 0.0
    %605 = vmatprep.subr.mxu0 0.0
    %606 = vmatpush2.xpose.msra.mxu0 0.0
    %607 = vmatprep.subr.mxu0 0.0
    %608 = vmatpush2.xpose.msra.mxu0 0.0
    %609 = vmatprep.subr.mxu0 0.0
    %610 = vmatpush2.xpose.msra.mxu0 0.0
    %611 = vmatprep.subr.mxu0 0.0
    %612 = vmatpush2.xpose.msra.mxu0 0.0
    %613 = vmatprep.subr.mxu0 0.0
    %614 = vmatpush2.xpose.msra.mxu0 0.0
    %615 = vmatprep.subr.mxu0 0.0
    %616 = vmatpush2.xpose.msra.mxu0 0.0
    %617 = vmatprep.subr.mxu0 0.0
    %618 = vmatpush2.xpose.msra.mxu0 0.0
    %619 = vmatprep.subr.mxu0 0.0
    %620 = vmatpush2.xpose.msra.mxu0 0.0
    %621 = vmatprep.subr.mxu0 0.0
    %622 = vmatpush2.xpose.msra.mxu0 0.0
    %623 = vmatprep.subr.mxu0 0.0
    %624 = vmatpush2.xpose.msra.mxu0 0.0
    %625 = vmatprep.subr.mxu0 0.0
    %626 = vmatpush2.xpose.msra.mxu0 0.0
    %627 = vmatprep.subr.mxu0 0.0
    %628 = vmatpush2.xpose.msra.mxu0 0.0
    %629 = vmatprep.subr.mxu0 0.0
    %630 = vmatpush2.xpose.msra.mxu0 0.0
    %631 = vmatprep.mubr.f32.mxu0 0.0
    %632 = vmatmul.mubr.f32.gmra.mxu0 %v563
    %v633 = vpop.f32.mrf.mxu0
    %v634 = vadd.f32 0.0, %v633
    %v635 = vpop.f32.mrf.mxu0
    %636 = vdwg.mxu0
    %v637 = vmul.f32 %v634, 0.35355338
    %v638 = vsel %vm160, %v637, -inf
    %639 = vmax.xlane.f32.xlu0 %v638
    %v640 = vpop.xlane.xlu0 %639
    %v641 = vsub.f32 %v637, %v640
    %v642 = vmul.f32 %v641, 1.442695
    %v643 = vpow.pop %v642
    %v644 = vsel %vm160, %v643, 0.0
    %645 = vadd.xlane.f32.xlu0 %v644
    %v646 = vpop.xlane.xlu0 %645
    %v647 = vrcp.pop %v646
    %v648 = vmul.f32 %v643, %v647
    %649 = vrot.lane.b32.xlu0 %v149, 64
    %v650 = vpop.permute.xlu0 %649
    %652 = vxpose.xlu0.b32.start [1/16] %v650, 128
    %653 = vxpose.xlu0.b32.cont [2/16] 0.0, 128
    %654 = vxpose.xlu0.b32.cont [3/16] 0.0, 128
    %655 = vxpose.xlu0.b32.cont [4/16] 0.0, 128
    %656 = vxpose.xlu0.b32.cont [5/16] 0.0, 128
    %657 = vxpose.xlu0.b32.cont [6/16] 0.0, 128
    %658 = vxpose.xlu0.b32.cont [7/16] 0.0, 128
    %659 = vxpose.xlu0.b32.cont [8/16] 0.0, 128
    %660 = vxpose.xlu0.b32.cont [9/16] 0.0, 128
    %661 = vxpose.xlu0.b32.cont [10/16] 0.0, 128
    %662 = vxpose.xlu0.b32.cont [11/16] 0.0, 128
    %663 = vxpose.xlu0.b32.cont [12/16] 0.0, 128
    %664 = vxpose.xlu0.b32.cont [13/16] 0.0, 128
    %665 = vxpose.xlu0.b32.cont [14/16] 0.0, 128
    %666 = vxpose.xlu0.b32.cont [15/16] 0.0, 128
    %667 = vxpose.xlu0.b32.end [16/16] 0.0, 128
    %v668 = vpop.trf.xlu0
    %v669 = vpop.trf.xlu0
    %v670 = vpop.trf.xlu0
    %v671 = vpop.trf.xlu0
    %v672 = vpop.trf.xlu0
    %v673 = vpop.trf.xlu0
    %v674 = vpop.trf.xlu0
    %v675 = vpop.trf.xlu0
    %v676 = vpop.trf.xlu0
    %v677 = vpop.trf.xlu0
    %v678 = vpop.trf.xlu0
    %v679 = vpop.trf.xlu0
    %v680 = vpop.trf.xlu0
    %v681 = vpop.trf.xlu0
    %v682 = vpop.trf.xlu0
    %v683 = vpop.trf.xlu0
    %v685 = vsel %vm160, %v668, 0
    %v688 = vsel %vm160, %v648, 0
    %690 = vmatprep.subr.mxu0 0.0
    %691 = vmatpush1.xpose.msra.mxu0 0.0
    %692 = vmatprep.subr.mxu0 0.0
    %693 = vmatpush1.xpose.msra.mxu0 0.0
    %694 = vmatprep.subr.mxu0 0.0
    %695 = vmatpush1.xpose.msra.mxu0 0.0
    %696 = vmatprep.subr.mxu0 0.0
    %697 = vmatpush1.xpose.msra.mxu0 0.0
    %698 = vmatprep.subr.mxu0 0.0
    %699 = vmatpush1.xpose.msra.mxu0 0.0
    %700 = vmatprep.subr.mxu0 0.0
    %701 = vmatpush1.xpose.msra.mxu0 0.0
    %702 = vmatprep.subr.mxu0 0.0
    %703 = vmatpush1.xpose.msra.mxu0 0.0
    %704 = vmatprep.subr.mxu0 0.0
    %705 = vmatpush1.xpose.msra.mxu0 0.0
    %706 = vmatprep.subr.mxu0 0.0
    %707 = vmatpush1.xpose.msra.mxu0 0.0
    %708 = vmatprep.subr.mxu0 0.0
    %709 = vmatpush1.xpose.msra.mxu0 0.0
    %710 = vmatprep.subr.mxu0 0.0
    %711 = vmatpush1.xpose.msra.mxu0 0.0
    %712 = vmatprep.subr.mxu0 0.0
    %713 = vmatpush1.xpose.msra.mxu0 0.0
    %714 = vmatprep.subr.mxu0 0.0
    %715 = vmatpush1.xpose.msra.mxu0 0.0
    %716 = vmatprep.subr.mxu0 0.0
    %717 = vmatpush1.xpose.msra.mxu0 0.0
    %718 = vmatprep.subr.mxu0 0.0
    %719 = vmatpush1.xpose.msra.mxu0 0.0
    %720 = vmatprep.subr.mxu0 0.0
    %721 = vmatpush1.xpose.msra.mxu0 %v688
    %722 = vmatprep.subr.mxu0 0.0
    %723 = vmatpush2.xpose.msra.mxu0 0.0
    %724 = vmatprep.subr.mxu0 0.0
    %725 = vmatpush2.xpose.msra.mxu0 0.0
    %726 = vmatprep.subr.mxu0 0.0
    %727 = vmatpush2.xpose.msra.mxu0 0.0
    %728 = vmatprep.subr.mxu0 0.0
    %729 = vmatpush2.xpose.msra.mxu0 0.0
    %730 = vmatprep.subr.mxu0 0.0
    %731 = vmatpush2.xpose.msra.mxu0 0.0
    %732 = vmatprep.subr.mxu0 0.0
    %733 = vmatpush2.xpose.msra.mxu0 0.0
    %734 = vmatprep.subr.mxu0 0.0
    %735 = vmatpush2.xpose.msra.mxu0 0.0
    %736 = vmatprep.subr.mxu0 0.0
    %737 = vmatpush2.xpose.msra.mxu0 0.0
    %738 = vmatprep.subr.mxu0 0.0
    %739 = vmatpush2.xpose.msra.mxu0 0.0
    %740 = vmatprep.subr.mxu0 0.0
    %741 = vmatpush2.xpose.msra.mxu0 0.0
    %742 = vmatprep.subr.mxu0 0.0
    %743 = vmatpush2.xpose.msra.mxu0 0.0
    %744 = vmatprep.subr.mxu0 0.0
    %745 = vmatpush2.xpose.msra.mxu0 0.0
    %746 = vmatprep.subr.mxu0 0.0
    %747 = vmatpush2.xpose.msra.mxu0 0.0
    %748 = vmatprep.subr.mxu0 0.0
    %749 = vmatpush2.xpose.msra.mxu0 0.0
    %750 = vmatprep.subr.mxu0 0.0
    %751 = vmatpush2.xpose.msra.mxu0 0.0
    %752 = vmatprep.subr.mxu0 0.0
    %753 = vmatpush2.xpose.msra.mxu0 0.0
    %754 = vmatprep.mubr.f32.mxu0 0.0
    %755 = vmatmul.mubr.f32.gmra.mxu0 %v685
    %v756 = vpop.f32.mrf.mxu0
    %v757 = vadd.f32 0.0, %v756
    %v758 = vpop.f32.mrf.mxu0
    %759 = vdwg.mxu0
    %760 = vrot.lane.b32.xlu0 %v149, 56
    %v761 = vpop.permute.xlu0 %760
    %762 = vrot.lane.b32.xlu0 %v149, 48
    %v763 = vpop.permute.xlu0 %762
    %v764 = vsel %vm160, %v761, 0
    %v766 = vsel %vm160, %v763, 0
    %768 = vmatprep.subr.mxu0 0.0
    %769 = vmatpush1.xpose.msra.mxu0 0.0
    %770 = vmatprep.subr.mxu0 0.0
    %771 = vmatpush1.xpose.msra.mxu0 0.0
    %772 = vmatprep.subr.mxu0 0.0
    %773 = vmatpush1.xpose.msra.mxu0 0.0
    %774 = vmatprep.subr.mxu0 0.0
    %775 = vmatpush1.xpose.msra.mxu0 0.0
    %776 = vmatprep.subr.mxu0 0.0
    %777 = vmatpush1.xpose.msra.mxu0 0.0
    %778 = vmatprep.subr.mxu0 0.0
    %779 = vmatpush1.xpose.msra.mxu0 0.0
    %780 = vmatprep.subr.mxu0 0.0
    %781 = vmatpush1.xpose.msra.mxu0 0.0
    %782 = vmatprep.subr.mxu0 0.0
    %783 = vmatpush1.xpose.msra.mxu0 0.0
    %784 = vmatprep.subr.mxu0 0.0
    %785 = vmatpush1.xpose.msra.mxu0 0.0
    %786 = vmatprep.subr.mxu0 0.0
    %787 = vmatpush1.xpose.msra.mxu0 0.0
    %788 = vmatprep.subr.mxu0 0.0
    %789 = vmatpush1.xpose.msra.mxu0 0.0
    %790 = vmatprep.subr.mxu0 0.0
    %791 = vmatpush1.xpose.msra.mxu0 0.0
    %792 = vmatprep.subr.mxu0 0.0
    %793 = vmatpush1.xpose.msra.mxu0 0.0
    %794 = vmatprep.subr.mxu0 0.0
    %795 = vmatpush1.xpose.msra.mxu0 0.0
    %796 = vmatprep.subr.mxu0 0.0
    %797 = vmatpush1.xpose.msra.mxu0 0.0
    %798 = vmatprep.subr.mxu0 0.0
    %799 = vmatpush1.xpose.msra.mxu0 %v766
    %800 = vmatprep.subr.mxu0 0.0
    %801 = vmatpush2.xpose.msra.mxu0 0.0
    %802 = vmatprep.subr.mxu0 0.0
    %803 = vmatpush2.xpose.msra.mxu0 0.0
    %804 = vmatprep.subr.mxu0 0.0
    %805 = vmatpush2.xpose.msra.mxu0 0.0
    %806 = vmatprep.subr.mxu0 0.0
    %807 = vmatpush2.xpose.msra.mxu0 0.0
    %808 = vmatprep.subr.mxu0 0.0
    %809 = vmatpush2.xpose.msra.mxu0 0.0
    %810 = vmatprep.subr.mxu0 0.0
    %811 = vmatpush2.xpose.msra.mxu0 0.0
    %812 = vmatprep.subr.mxu0 0.0
    %813 = vmatpush2.xpose.msra.mxu0 0.0
    %814 = vmatprep.subr.mxu0 0.0
    %815 = vmatpush2.xpose.msra.mxu0 0.0
    %816 = vmatprep.subr.mxu0 0.0
    %817 = vmatpush2.xpose.msra.mxu0 0.0
    %818 = vmatprep.subr.mxu0 0.0
    %819 = vmatpush2.xpose.msra.mxu0 0.0
    %820 = vmatprep.subr.mxu0 0.0
    %821 = vmatpush2.xpose.msra.mxu0 0.0
    %822 = vmatprep.subr.mxu0 0.0
    %823 = vmatpush2.xpose.msra.mxu0 0.0
    %824 = vmatprep.subr.mxu0 0.0
    %825 = vmatpush2.xpose.msra.mxu0 0.0
    %826 = vmatprep.subr.mxu0 0.0
    %827 = vmatpush2.xpose.msra.mxu0 0.0
    %828 = vmatprep.subr.mxu0 0.0
    %829 = vmatpush2.xpose.msra.mxu0 0.0
    %830 = vmatprep.subr.mxu0 0.0
    %831 = vmatpush2.xpose.msra.mxu0 0.0
    %832 = vmatprep.mubr.f32.mxu0 0.0
    %833 = vmatmul.mubr.f32.gmra.mxu0 %v764
    %v834 = vpop.f32.mrf.mxu0
    %v835 = vadd.f32 0.0, %v834
    %v836 = vpop.f32.mrf.mxu0
    %837 = vdwg.mxu0
    %v838 = vmul.f32 %v835, 0.35355338
    %v839 = vsel %vm160, %v838, -inf
    %840 = vmax.xlane.f32.xlu0 %v839
    %v841 = vpop.xlane.xlu0 %840
    %v842 = vsub.f32 %v838, %v841
    %v843 = vmul.f32 %v842, 1.442695
    %v844 = vpow.pop %v843
    %v845 = vsel %vm160, %v844, 0.0
    %846 = vadd.xlane.f32.xlu0 %v845
    %v847 = vpop.xlane.xlu0 %846
    %v848 = vrcp.pop %v847
    %v849 = vmul.f32 %v844, %v848
    %850 = vrot.lane.b32.xlu0 %v149, 40
    %v851 = vpop.permute.xlu0 %850
    %853 = vxpose.xlu0.b32.start [1/16] %v851, 128
    %854 = vxpose.xlu0.b32.cont [2/16] 0.0, 128
    %855 = vxpose.xlu0.b32.cont [3/16] 0.0, 128
    %856 = vxpose.xlu0.b32.cont [4/16] 0.0, 128
    %857 = vxpose.xlu0.b32.cont [5/16] 0.0, 128
    %858 = vxpose.xlu0.b32.cont [6/16] 0.0, 128
    %859 = vxpose.xlu0.b32.cont [7/16] 0.0, 128
    %860 = vxpose.xlu0.b32.cont [8/16] 0.0, 128
    %861 = vxpose.xlu0.b32.cont [9/16] 0.0, 128
    %862 = vxpose.xlu0.b32.cont [10/16] 0.0, 128
    %863 = vxpose.xlu0.b32.cont [11/16] 0.0, 128
    %864 = vxpose.xlu0.b32.cont [12/16] 0.0, 128
    %865 = vxpose.xlu0.b32.cont [13/16] 0.0, 128
    %866 = vxpose.xlu0.b32.cont [14/16] 0.0, 128
    %867 = vxpose.xlu0.b32.cont [15/16] 0.0, 128
    %868 = vxpose.xlu0.b32.end [16/16] 0.0, 128
    %v869 = vpop.trf.xlu0
    %v870 = vpop.trf.xlu0
    %v871 = vpop.trf.xlu0
    %v872 = vpop.trf.xlu0
    %v873 = vpop.trf.xlu0
    %v874 = vpop.trf.xlu0
    %v875 = vpop.trf.xlu0
    %v876 = vpop.trf.xlu0
    %v877 = vpop.trf.xlu0
    %v878 = vpop.trf.xlu0
    %v879 = vpop.trf.xlu0
    %v880 = vpop.trf.xlu0
    %v881 = vpop.trf.xlu0
    %v882 = vpop.trf.xlu0
    %v883 = vpop.trf.xlu0
    %v884 = vpop.trf.xlu0
    %v886 = vsel %vm160, %v869, 0
    %v889 = vsel %vm160, %v849, 0
    %891 = vmatprep.subr.mxu0 0.0
    %892 = vmatpush1.xpose.msra.mxu0 0.0
    %893 = vmatprep.subr.mxu0 0.0
    %894 = vmatpush1.xpose.msra.mxu0 0.0
    %895 = vmatprep.subr.mxu0 0.0
    %896 = vmatpush1.xpose.msra.mxu0 0.0
    %897 = vmatprep.subr.mxu0 0.0
    %898 = vmatpush1.xpose.msra.mxu0 0.0
    %899 = vmatprep.subr.mxu0 0.0
    %900 = vmatpush1.xpose.msra.mxu0 0.0
    %901 = vmatprep.subr.mxu0 0.0
    %902 = vmatpush1.xpose.msra.mxu0 0.0
    %903 = vmatprep.subr.mxu0 0.0
    %904 = vmatpush1.xpose.msra.mxu0 0.0
    %905 = vmatprep.subr.mxu0 0.0
    %906 = vmatpush1.xpose.msra.mxu0 0.0
    %907 = vmatprep.subr.mxu0 0.0
    %908 = vmatpush1.xpose.msra.mxu0 0.0
    %909 = vmatprep.subr.mxu0 0.0
    %910 = vmatpush1.xpose.msra.mxu0 0.0
    %911 = vmatprep.subr.mxu0 0.0
    %912 = vmatpush1.xpose.msra.mxu0 0.0
    %913 = vmatprep.subr.mxu0 0.0
    %914 = vmatpush1.xpose.msra.mxu0 0.0
    %915 = vmatprep.subr.mxu0 0.0
    %916 = vmatpush1.xpose.msra.mxu0 0.0
    %917 = vmatprep.subr.mxu0 0.0
    %918 = vmatpush1.xpose.msra.mxu0 0.0
    %919 = vmatprep.subr.mxu0 0.0
    %920 = vmatpush1.xpose.msra.mxu0 0.0
    %921 = vmatprep.subr.mxu0 0.0
    %922 = vmatpush1.xpose.msra.mxu0 %v889
    %923 = vmatprep.subr.mxu0 0.0
    %924 = vmatpush2.xpose.msra.mxu0 0.0
    %925 = vmatprep.subr.mxu0 0.0
    %926 = vmatpush2.xpose.msra.mxu0 0.0
    %927 = vmatprep.subr.mxu0 0.0
    %928 = vmatpush2.xpose.msra.mxu0 0.0
    %929 = vmatprep.subr.mxu0 0.0
    %930 = vmatpush2.xpose.msra.mxu0 0.0
    %931 = vmatprep.subr.mxu0 0.0
    %932 = vmatpush2.xpose.msra.mxu0 0.0
    %933 = vmatprep.subr.mxu0 0.0
    %934 = vmatpush2.xpose.msra.mxu0 0.0
    %935 = vmatprep.subr.mxu0 0.0
    %936 = vmatpush2.xpose.msra.mxu0 0.0
    %937 = vmatprep.subr.mxu0 0.0
    %938 = vmatpush2.xpose.msra.mxu0 0.0
    %939 = vmatprep.subr.mxu0 0.0
    %940 = vmatpush2.xpose.msra.mxu0 0.0
    %941 = vmatprep.subr.mxu0 0.0
    %942 = vmatpush2.xpose.msra.mxu0 0.0
    %943 = vmatprep.subr.mxu0 0.0
    %944 = vmatpush2.xpose.msra.mxu0 0.0
    %945 = vmatprep.subr.mxu0 0.0
    %946 = vmatpush2.xpose.msra.mxu0 0.0
    %947 = vmatprep.subr.mxu0 0.0
    %948 = vmatpush2.xpose.msra.mxu0 0.0
    %949 = vmatprep.subr.mxu0 0.0
    %950 = vmatpush2.xpose.msra.mxu0 0.0
    %951 = vmatprep.subr.mxu0 0.0
    %952 = vmatpush2.xpose.msra.mxu0 0.0
    %953 = vmatprep.subr.mxu0 0.0
    %954 = vmatpush2.xpose.msra.mxu0 0.0
    %955 = vmatprep.mubr.f32.mxu0 0.0
    %956 = vmatmul.mubr.f32.gmra.mxu0 %v886
    %v957 = vpop.f32.mrf.mxu0
    %v958 = vadd.f32 0.0, %v957
    %v959 = vpop.f32.mrf.mxu0
    %960 = vdwg.mxu0
    %962 = vrot.lane.b32.xlu0 %v556, 8
    %v963 = vpop.permute.xlu0 %962
    %966 = vrot.lane.b32.xlu0 %v757, 16
    %v967 = vpop.permute.xlu0 %966
    %970 = vrot.lane.b32.xlu0 %v958, 24
    %v971 = vpop.permute.xlu0 %970
    %v973 = vsel %vm160, %v355, %v963
    %vm974 = vcmask 130048
    %v975 = vsel %vm974, %v973, %v967
    %vm976 = vcmask 195584
    %v977 = vsel %vm976, %v975, %v971
    %979 = vrot.lane.b32.xlu0 %v154, 120
    %v980 = vpop.permute.xlu0 %979
    %v981 = vsel %vm160, %v154, 0
    %v983 = vsel %vm160, %v980, 0
    %985 = vmatprep.subr.mxu0 0.0
    %986 = vmatpush1.xpose.msra.mxu0 0.0
    %987 = vmatprep.subr.mxu0 0.0
    %988 = vmatpush1.xpose.msra.mxu0 0.0
    %989 = vmatprep.subr.mxu0 0.0
    %990 = vmatpush1.xpose.msra.mxu0 0.0
    %991 = vmatprep.subr.mxu0 0.0
    %992 = vmatpush1.xpose.msra.mxu0 0.0
    %993 = vmatprep.subr.mxu0 0.0
    %994 = vmatpush1.xpose.msra.mxu0 0.0
    %995 = vmatprep.subr.mxu0 0.0
    %996 = vmatpush1.xpose.msra.mxu0 0.0
    %997 = vmatprep.subr.mxu0 0.0
    %998 = vmatpush1.xpose.msra.mxu0 0.0
    %999 = vmatprep.subr.mxu0 0.0
    %1000 = vmatpush1.xpose.msra.mxu0 0.0
    %1001 = vmatprep.subr.mxu0 0.0
    %1002 = vmatpush1.xpose.msra.mxu0 0.0
    %1003 = vmatprep.subr.mxu0 0.0
    %1004 = vmatpush1.xpose.msra.mxu0 0.0
    %1005 = vmatprep.subr.mxu0 0.0
    %1006 = vmatpush1.xpose.msra.mxu0 0.0
    %1007 = vmatprep.subr.mxu0 0.0
    %1008 = vmatpush1.xpose.msra.mxu0 0.0
    %1009 = vmatprep.subr.mxu0 0.0
    %1010 = vmatpush1.xpose.msra.mxu0 0.0
    %1011 = vmatprep.subr.mxu0 0.0
    %1012 = vmatpush1.xpose.msra.mxu0 0.0
    %1013 = vmatprep.subr.mxu0 0.0
    %1014 = vmatpush1.xpose.msra.mxu0 0.0
    %1015 = vmatprep.subr.mxu0 0.0
    %1016 = vmatpush1.xpose.msra.mxu0 %v983
    %1017 = vmatprep.subr.mxu0 0.0
    %1018 = vmatpush2.xpose.msra.mxu0 0.0
    %1019 = vmatprep.subr.mxu0 0.0
    %1020 = vmatpush2.xpose.msra.mxu0 0.0
    %1021 = vmatprep.subr.mxu0 0.0
    %1022 = vmatpush2.xpose.msra.mxu0 0.0
    %1023 = vmatprep.subr.mxu0 0.0
    %1024 = vmatpush2.xpose.msra.mxu0 0.0
    %1025 = vmatprep.subr.mxu0 0.0
    %1026 = vmatpush2.xpose.msra.mxu0 0.0
    %1027 = vmatprep.subr.mxu0 0.0
    %1028 = vmatpush2.xpose.msra.mxu0 0.0
    %1029 = vmatprep.subr.mxu0 0.0
    %1030 = vmatpush2.xpose.msra.mxu0 0.0
    %1031 = vmatprep.subr.mxu0 0.0
    %1032 = vmatpush2.xpose.msra.mxu0 0.0
    %1033 = vmatprep.subr.mxu0 0.0
    %1034 = vmatpush2.xpose.msra.mxu0 0.0
    %1035 = vmatprep.subr.mxu0 0.0
    %1036 = vmatpush2.xpose.msra.mxu0 0.0
    %1037 = vmatprep.subr.mxu0 0.0
    %1038 = vmatpush2.xpose.msra.mxu0 0.0
    %1039 = vmatprep.subr.mxu0 0.0
    %1040 = vmatpush2.xpose.msra.mxu0 0.0
    %1041 = vmatprep.subr.mxu0 0.0
    %1042 = vmatpush2.xpose.msra.mxu0 0.0
    %1043 = vmatprep.subr.mxu0 0.0
    %1044 = vmatpush2.xpose.msra.mxu0 0.0
    %1045 = vmatprep.subr.mxu0 0.0
    %1046 = vmatpush2.xpose.msra.mxu0 0.0
    %1047 = vmatprep.subr.mxu0 0.0
    %1048 = vmatpush2.xpose.msra.mxu0 0.0
    %1049 = vmatprep.mubr.f32.mxu0 0.0
    %1050 = vmatmul.mubr.f32.gmra.mxu0 %v981
    %v1051 = vpop.f32.mrf.mxu0
    %v1052 = vadd.f32 0.0, %v1051
    %v1053 = vpop.f32.mrf.mxu0
    %1054 = vdwg.mxu0
    %v1055 = vmul.f32 %v1052, 0.35355338
    %v1056 = vsel %vm160, %v1055, -inf
    %1057 = vmax.xlane.f32.xlu0 %v1056
    %v1058 = vpop.xlane.xlu0 %1057
    %v1059 = vsub.f32 %v1055, %v1058
    %v1060 = vmul.f32 %v1059, 1.442695
    %v1061 = vpow.pop %v1060
    %v1062 = vsel %vm160, %v1061, 0.0
    %1063 = vadd.xlane.f32.xlu0 %v1062
    %v1064 = vpop.xlane.xlu0 %1063
    %v1065 = vrcp.pop %v1064
    %v1066 = vmul.f32 %v1061, %v1065
    %1067 = vrot.lane.b32.xlu0 %v154, 112
    %v1068 = vpop.permute.xlu0 %1067
    %1070 = vxpose.xlu0.b32.start [1/16] %v1068, 128
    %1071 = vxpose.xlu0.b32.cont [2/16] 0.0, 128
    %1072 = vxpose.xlu0.b32.cont [3/16] 0.0, 128
    %1073 = vxpose.xlu0.b32.cont [4/16] 0.0, 128
    %1074 = vxpose.xlu0.b32.cont [5/16] 0.0, 128
    %1075 = vxpose.xlu0.b32.cont [6/16] 0.0, 128
    %1076 = vxpose.xlu0.b32.cont [7/16] 0.0, 128
    %1077 = vxpose.xlu0.b32.cont [8/16] 0.0, 128
    %1078 = vxpose.xlu0.b32.cont [9/16] 0.0, 128
    %1079 = vxpose.xlu0.b32.cont [10/16] 0.0, 128
    %1080 = vxpose.xlu0.b32.cont [11/16] 0.0, 128
    %1081 = vxpose.xlu0.b32.cont [12/16] 0.0, 128
    %1082 = vxpose.xlu0.b32.cont [13/16] 0.0, 128
    %1083 = vxpose.xlu0.b32.cont [14/16] 0.0, 128
    %1084 = vxpose.xlu0.b32.cont [15/16] 0.0, 128
    %1085 = vxpose.xlu0.b32.end [16/16] 0.0, 128
    %v1086 = vpop.trf.xlu0
    %v1087 = vpop.trf.xlu0
    %v1088 = vpop.trf.xlu0
    %v1089 = vpop.trf.xlu0
    %v1090 = vpop.trf.xlu0
    %v1091 = vpop.trf.xlu0
    %v1092 = vpop.trf.xlu0
    %v1093 = vpop.trf.xlu0
    %v1094 = vpop.trf.xlu0
    %v1095 = vpop.trf.xlu0
    %v1096 = vpop.trf.xlu0
    %v1097 = vpop.trf.xlu0
    %v1098 = vpop.trf.xlu0
    %v1099 = vpop.trf.xlu0
    %v1100 = vpop.trf.xlu0
    %v1101 = vpop.trf.xlu0
    %v1103 = vsel %vm160, %v1086, 0
    %v1106 = vsel %vm160, %v1066, 0
    %1108 = vmatprep.subr.mxu0 0.0
    %1109 = vmatpush1.xpose.msra.mxu0 0.0
    %1110 = vmatprep.subr.mxu0 0.0
    %1111 = vmatpush1.xpose.msra.mxu0 0.0
    %1112 = vmatprep.subr.mxu0 0.0
    %1113 = vmatpush1.xpose.msra.mxu0 0.0
    %1114 = vmatprep.subr.mxu0 0.0
    %1115 = vmatpush1.xpose.msra.mxu0 0.0
    %1116 = vmatprep.subr.mxu0 0.0
    %1117 = vmatpush1.xpose.msra.mxu0 0.0
    %1118 = vmatprep.subr.mxu0 0.0
    %1119 = vmatpush1.xpose.msra.mxu0 0.0
    %1120 = vmatprep.subr.mxu0 0.0
    %1121 = vmatpush1.xpose.msra.mxu0 0.0
    %1122 = vmatprep.subr.mxu0 0.0
    %1123 = vmatpush1.xpose.msra.mxu0 0.0
    %1124 = vmatprep.subr.mxu0 0.0
    %1125 = vmatpush1.xpose.msra.mxu0 0.0
    %1126 = vmatprep.subr.mxu0 0.0
    %1127 = vmatpush1.xpose.msra.mxu0 0.0
    %1128 = vmatprep.subr.mxu0 0.0
    %1129 = vmatpush1.xpose.msra.mxu0 0.0
    %1130 = vmatprep.subr.mxu0 0.0
    %1131 = vmatpush1.xpose.msra.mxu0 0.0
    %1132 = vmatprep.subr.mxu0 0.0
    %1133 = vmatpush1.xpose.msra.mxu0 0.0
    %1134 = vmatprep.subr.mxu0 0.0
    %1135 = vmatpush1.xpose.msra.mxu0 0.0
    %1136 = vmatprep.subr.mxu0 0.0
    %1137 = vmatpush1.xpose.msra.mxu0 0.0
    %1138 = vmatprep.subr.mxu0 0.0
    %1139 = vmatpush1.xpose.msra.mxu0 %v1106
    %1140 = vmatprep.subr.mxu0 0.0
    %1141 = vmatpush2.xpose.msra.mxu0 0.0
    %1142 = vmatprep.subr.mxu0 0.0
    %1143 = vmatpush2.xpose.msra.mxu0 0.0
    %1144 = vmatprep.subr.mxu0 0.0
    %1145 = vmatpush2.xpose.msra.mxu0 0.0
    %1146 = vmatprep.subr.mxu0 0.0
    %1147 = vmatpush2.xpose.msra.mxu0 0.0
    %1148 = vmatprep.subr.mxu0 0.0
    %1149 = vmatpush2.xpose.msra.mxu0 0.0
    %1150 = vmatprep.subr.mxu0 0.0
    %1151 = vmatpush2.xpose.msra.mxu0 0.0
    %1152 = vmatprep.subr.mxu0 0.0
    %1153 = vmatpush2.xpose.msra.mxu0 0.0
    %1154 = vmatprep.subr.mxu0 0.0
    %1155 = vmatpush2.xpose.msra.mxu0 0.0
    %1156 = vmatprep.subr.mxu0 0.0
    %1157 = vmatpush2.xpose.msra.mxu0 0.0
    %1158 = vmatprep.subr.mxu0 0.0
    %1159 = vmatpush2.xpose.msra.mxu0 0.0
    %1160 = vmatprep.subr.mxu0 0.0
    %1161 = vmatpush2.xpose.msra.mxu0 0.0
    %1162 = vmatprep.subr.mxu0 0.0
    %1163 = vmatpush2.xpose.msra.mxu0 0.0
    %1164 = vmatprep.subr.mxu0 0.0
    %1165 = vmatpush2.xpose.msra.mxu0 0.0
    %1166 = vmatprep.subr.mxu0 0.0
    %1167 = vmatpush2.xpose.msra.mxu0 0.0
    %1168 = vmatprep.subr.mxu0 0.0
    %1169 = vmatpush2.xpose.msra.mxu0 0.0
    %1170 = vmatprep.subr.mxu0 0.0
    %1171 = vmatpush2.xpose.msra.mxu0 0.0
    %1172 = vmatprep.mubr.f32.mxu0 0.0
    %1173 = vmatmul.mubr.f32.gmra.mxu0 %v1103
    %v1174 = vpop.f32.mrf.mxu0
    %v1175 = vadd.f32 0.0, %v1174
    %v1176 = vpop.f32.mrf.mxu0
    %1177 = vdwg.mxu0
    %1178 = vrot.lane.b32.xlu0 %v154, 104
    %v1179 = vpop.permute.xlu0 %1178
    %1180 = vrot.lane.b32.xlu0 %v154, 96
    %v1181 = vpop.permute.xlu0 %1180
    %v1182 = vsel %vm160, %v1179, 0
    %v1184 = vsel %vm160, %v1181, 0
    %1186 = vmatprep.subr.mxu0 0.0
    %1187 = vmatpush1.xpose.msra.mxu0 0.0
    %1188 = vmatprep.subr.mxu0 0.0
    %1189 = vmatpush1.xpose.msra.mxu0 0.0
    %1190 = vmatprep.subr.mxu0 0.0
    %1191 = vmatpush1.xpose.msra.mxu0 0.0
    %1192 = vmatprep.subr.mxu0 0.0
    %1193 = vmatpush1.xpose.msra.mxu0 0.0
    %1194 = vmatprep.subr.mxu0 0.0
    %1195 = vmatpush1.xpose.msra.mxu0 0.0
    %1196 = vmatprep.subr.mxu0 0.0
    %1197 = vmatpush1.xpose.msra.mxu0 0.0
    %1198 = vmatprep.subr.mxu0 0.0
    %1199 = vmatpush1.xpose.msra.mxu0 0.0
    %1200 = vmatprep.subr.mxu0 0.0
    %1201 = vmatpush1.xpose.msra.mxu0 0.0
    %1202 = vmatprep.subr.mxu0 0.0
    %1203 = vmatpush1.xpose.msra.mxu0 0.0
    %1204 = vmatprep.subr.mxu0 0.0
    %1205 = vmatpush1.xpose.msra.mxu0 0.0
    %1206 = vmatprep.subr.mxu0 0.0
    %1207 = vmatpush1.xpose.msra.mxu0 0.0
    %1208 = vmatprep.subr.mxu0 0.0
    %1209 = vmatpush1.xpose.msra.mxu0 0.0
    %1210 = vmatprep.subr.mxu0 0.0
    %1211 = vmatpush1.xpose.msra.mxu0 0.0
    %1212 = vmatprep.subr.mxu0 0.0
    %1213 = vmatpush1.xpose.msra.mxu0 0.0
    %1214 = vmatprep.subr.mxu0 0.0
    %1215 = vmatpush1.xpose.msra.mxu0 0.0
    %1216 = vmatprep.subr.mxu0 0.0
    %1217 = vmatpush1.xpose.msra.mxu0 %v1184
    %1218 = vmatprep.subr.mxu0 0.0
    %1219 = vmatpush2.xpose.msra.mxu0 0.0
    %1220 = vmatprep.subr.mxu0 0.0
    %1221 = vmatpush2.xpose.msra.mxu0 0.0
    %1222 = vmatprep.subr.mxu0 0.0
    %1223 = vmatpush2.xpose.msra.mxu0 0.0
    %1224 = vmatprep.subr.mxu0 0.0
    %1225 = vmatpush2.xpose.msra.mxu0 0.0
    %1226 = vmatprep.subr.mxu0 0.0
    %1227 = vmatpush2.xpose.msra.mxu0 0.0
    %1228 = vmatprep.subr.mxu0 0.0
    %1229 = vmatpush2.xpose.msra.mxu0 0.0
    %1230 = vmatprep.subr.mxu0 0.0
    %1231 = vmatpush2.xpose.msra.mxu0 0.0
    %1232 = vmatprep.subr.mxu0 0.0
    %1233 = vmatpush2.xpose.msra.mxu0 0.0
    %1234 = vmatprep.subr.mxu0 0.0
    %1235 = vmatpush2.xpose.msra.mxu0 0.0
    %1236 = vmatprep.subr.mxu0 0.0
    %1237 = vmatpush2.xpose.msra.mxu0 0.0
    %1238 = vmatprep.subr.mxu0 0.0
    %1239 = vmatpush2.xpose.msra.mxu0 0.0
    %1240 = vmatprep.subr.mxu0 0.0
    %1241 = vmatpush2.xpose.msra.mxu0 0.0
    %1242 = vmatprep.subr.mxu0 0.0
    %1243 = vmatpush2.xpose.msra.mxu0 0.0
    %1244 = vmatprep.subr.mxu0 0.0
    %1245 = vmatpush2.xpose.msra.mxu0 0.0
    %1246 = vmatprep.subr.mxu0 0.0
    %1247 = vmatpush2.xpose.msra.mxu0 0.0
    %1248 = vmatprep.subr.mxu0 0.0
    %1249 = vmatpush2.xpose.msra.mxu0 0.0
    %1250 = vmatprep.mubr.f32.mxu0 0.0
    %1251 = vmatmul.mubr.f32.gmra.mxu0 %v1182
    %v1252 = vpop.f32.mrf.mxu0
    %v1253 = vadd.f32 0.0, %v1252
    %v1254 = vpop.f32.mrf.mxu0
    %1255 = vdwg.mxu0
    %v1256 = vmul.f32 %v1253, 0.35355338
    %v1257 = vsel %vm160, %v1256, -inf
    %1258 = vmax.xlane.f32.xlu0 %v1257
    %v1259 = vpop.xlane.xlu0 %1258
    %v1260 = vsub.f32 %v1256, %v1259
    %v1261 = vmul.f32 %v1260, 1.442695
    %v1262 = vpow.pop %v1261
    %v1263 = vsel %vm160, %v1262, 0.0
    %1264 = vadd.xlane.f32.xlu0 %v1263
    %v1265 = vpop.xlane.xlu0 %1264
    %v1266 = vrcp.pop %v1265
    %v1267 = vmul.f32 %v1262, %v1266
    %1268 = vrot.lane.b32.xlu0 %v154, 88
    %v1269 = vpop.permute.xlu0 %1268
    %1271 = vxpose.xlu0.b32.start [1/16] %v1269, 128
    %1272 = vxpose.xlu0.b32.cont [2/16] 0.0, 128
    %1273 = vxpose.xlu0.b32.cont [3/16] 0.0, 128
    %1274 = vxpose.xlu0.b32.cont [4/16] 0.0, 128
    %1275 = vxpose.xlu0.b32.cont [5/16] 0.0, 128
    %1276 = vxpose.xlu0.b32.cont [6/16] 0.0, 128
    %1277 = vxpose.xlu0.b32.cont [7/16] 0.0, 128
    %1278 = vxpose.xlu0.b32.cont [8/16] 0.0, 128
    %1279 = vxpose.xlu0.b32.cont [9/16] 0.0, 128
    %1280 = vxpose.xlu0.b32.cont [10/16] 0.0, 128
    %1281 = vxpose.xlu0.b32.cont [11/16] 0.0, 128
    %1282 = vxpose.xlu0.b32.cont [12/16] 0.0, 128
    %1283 = vxpose.xlu0.b32.cont [13/16] 0.0, 128
    %1284 = vxpose.xlu0.b32.cont [14/16] 0.0, 128
    %1285 = vxpose.xlu0.b32.cont [15/16] 0.0, 128
    %1286 = vxpose.xlu0.b32.end [16/16] 0.0, 128
    %v1287 = vpop.trf.xlu0
    %v1288 = vpop.trf.xlu0
    %v1289 = vpop.trf.xlu0
    %v1290 = vpop.trf.xlu0
    %v1291 = vpop.trf.xlu0
    %v1292 = vpop.trf.xlu0
    %v1293 = vpop.trf.xlu0
    %v1294 = vpop.trf.xlu0
    %v1295 = vpop.trf.xlu0
    %v1296 = vpop.trf.xlu0
    %v1297 = vpop.trf.xlu0
    %v1298 = vpop.trf.xlu0
    %v1299 = vpop.trf.xlu0
    %v1300 = vpop.trf.xlu0
    %v1301 = vpop.trf.xlu0
    %v1302 = vpop.trf.xlu0
    %v1304 = vsel %vm160, %v1287, 0
    %v1307 = vsel %vm160, %v1267, 0
    %1309 = vmatprep.subr.mxu0 0.0
    %1310 = vmatpush1.xpose.msra.mxu0 0.0
    %1311 = vmatprep.subr.mxu0 0.0
    %1312 = vmatpush1.xpose.msra.mxu0 0.0
    %1313 = vmatprep.subr.mxu0 0.0
    %1314 = vmatpush1.xpose.msra.mxu0 0.0
    %1315 = vmatprep.subr.mxu0 0.0
    %1316 = vmatpush1.xpose.msra.mxu0 0.0
    %1317 = vmatprep.subr.mxu0 0.0
    %1318 = vmatpush1.xpose.msra.mxu0 0.0
    %1319 = vmatprep.subr.mxu0 0.0
    %1320 = vmatpush1.xpose.msra.mxu0 0.0
    %1321 = vmatprep.subr.mxu0 0.0
    %1322 = vmatpush1.xpose.msra.mxu0 0.0
    %1323 = vmatprep.subr.mxu0 0.0
    %1324 = vmatpush1.xpose.msra.mxu0 0.0
    %1325 = vmatprep.subr.mxu0 0.0
    %1326 = vmatpush1.xpose.msra.mxu0 0.0
    %1327 = vmatprep.subr.mxu0 0.0
    %1328 = vmatpush1.xpose.msra.mxu0 0.0
    %1329 = vmatprep.subr.mxu0 0.0
    %1330 = vmatpush1.xpose.msra.mxu0 0.0
    %1331 = vmatprep.subr.mxu0 0.0
    %1332 = vmatpush1.xpose.msra.mxu0 0.0
    %1333 = vmatprep.subr.mxu0 0.0
    %1334 = vmatpush1.xpose.msra.mxu0 0.0
    %1335 = vmatprep.subr.mxu0 0.0
    %1336 = vmatpush1.xpose.msra.mxu0 0.0
    %1337 = vmatprep.subr.mxu0 0.0
    %1338 = vmatpush1.xpose.msra.mxu0 0.0
    %1339 = vmatprep.subr.mxu0 0.0
    %1340 = vmatpush1.xpose.msra.mxu0 %v1307
    %1341 = vmatprep.subr.mxu0 0.0
    %1342 = vmatpush2.xpose.msra.mxu0 0.0
    %1343 = vmatprep.subr.mxu0 0.0
    %1344 = vmatpush2.xpose.msra.mxu0 0.0
    %1345 = vmatprep.subr.mxu0 0.0
    %1346 = vmatpush2.xpose.msra.mxu0 0.0
    %1347 = vmatprep.subr.mxu0 0.0
    %1348 = vmatpush2.xpose.msra.mxu0 0.0
    %1349 = vmatprep.subr.mxu0 0.0
    %1350 = vmatpush2.xpose.msra.mxu0 0.0
    %1351 = vmatprep.subr.mxu0 0.0
    %1352 = vmatpush2.xpose.msra.mxu0 0.0
    %1353 = vmatprep.subr.mxu0 0.0
    %1354 = vmatpush2.xpose.msra.mxu0 0.0
    %1355 = vmatprep.subr.mxu0 0.0
    %1356 = vmatpush2.xpose.msra.mxu0 0.0
    %1357 = vmatprep.subr.mxu0 0.0
    %1358 = vmatpush2.xpose.msra.mxu0 0.0
    %1359 = vmatprep.subr.mxu0 0.0
    %1360 = vmatpush2.xpose.msra.mxu0 0.0
    %1361 = vmatprep.subr.mxu0 0.0
    %1362 = vmatpush2.xpose.msra.mxu0 0.0
    %1363 = vmatprep.subr.mxu0 0.0
    %1364 = vmatpush2.xpose.msra.mxu0 0.0
    %1365 = vmatprep.subr.mxu0 0.0
    %1366 = vmatpush2.xpose.msra.mxu0 0.0
    %1367 = vmatprep.subr.mxu0 0.0
    %1368 = vmatpush2.xpose.msra.mxu0 0.0
    %1369 = vmatprep.subr.mxu0 0.0
    %1370 = vmatpush2.xpose.msra.mxu0 0.0
    %1371 = vmatprep.subr.mxu0 0.0
    %1372 = vmatpush2.xpose.msra.mxu0 0.0
    %1373 = vmatprep.mubr.f32.mxu0 0.0
    %1374 = vmatmul.mubr.f32.gmra.mxu0 %v1304
    %v1375 = vpop.f32.mrf.mxu0
    %v1376 = vadd.f32 0.0, %v1375
    %v1377 = vpop.f32.mrf.mxu0
    %1378 = vdwg.mxu0
    %1379 = vrot.lane.b32.xlu0 %v154, 80
    %v1380 = vpop.permute.xlu0 %1379
    %1381 = vrot.lane.b32.xlu0 %v154, 72
    %v1382 = vpop.permute.xlu0 %1381
    %v1383 = vsel %vm160, %v1380, 0
    %v1385 = vsel %vm160, %v1382, 0
    %1387 = vmatprep.subr.mxu0 0.0
    %1388 = vmatpush1.xpose.msra.mxu0 0.0
    %1389 = vmatprep.subr.mxu0 0.0
    %1390 = vmatpush1.xpose.msra.mxu0 0.0
    %1391 = vmatprep.subr.mxu0 0.0
    %1392 = vmatpush1.xpose.msra.mxu0 0.0
    %1393 = vmatprep.subr.mxu0 0.0
    %1394 = vmatpush1.xpose.msra.mxu0 0.0
    %1395 = vmatprep.subr.mxu0 0.0
    %1396 = vmatpush1.xpose.msra.mxu0 0.0
    %1397 = vmatprep.subr.mxu0 0.0
    %1398 = vmatpush1.xpose.msra.mxu0 0.0
    %1399 = vmatprep.subr.mxu0 0.0
    %1400 = vmatpush1.xpose.msra.mxu0 0.0
    %1401 = vmatprep.subr.mxu0 0.0
    %1402 = vmatpush1.xpose.msra.mxu0 0.0
    %1403 = vmatprep.subr.mxu0 0.0
    %1404 = vmatpush1.xpose.msra.mxu0 0.0
    %1405 = vmatprep.subr.mxu0 0.0
    %1406 = vmatpush1.xpose.msra.mxu0 0.0
    %1407 = vmatprep.subr.mxu0 0.0
    %1408 = vmatpush1.xpose.msra.mxu0 0.0
    %1409 = vmatprep.subr.mxu0 0.0
    %1410 = vmatpush1.xpose.msra.mxu0 0.0
    %1411 = vmatprep.subr.mxu0 0.0
    %1412 = vmatpush1.xpose.msra.mxu0 0.0
    %1413 = vmatprep.subr.mxu0 0.0
    %1414 = vmatpush1.xpose.msra.mxu0 0.0
    %1415 = vmatprep.subr.mxu0 0.0
    %1416 = vmatpush1.xpose.msra.mxu0 0.0
    %1417 = vmatprep.subr.mxu0 0.0
    %1418 = vmatpush1.xpose.msra.mxu0 %v1385
    %1419 = vmatprep.subr.mxu0 0.0
    %1420 = vmatpush2.xpose.msra.mxu0 0.0
    %1421 = vmatprep.subr.mxu0 0.0
    %1422 = vmatpush2.xpose.msra.mxu0 0.0
    %1423 = vmatprep.subr.mxu0 0.0
    %1424 = vmatpush2.xpose.msra.mxu0 0.0
    %1425 = vmatprep.subr.mxu0 0.0
    %1426 = vmatpush2.xpose.msra.mxu0 0.0
    %1427 = vmatprep.subr.mxu0 0.0
    %1428 = vmatpush2.xpose.msra.mxu0 0.0
    %1429 = vmatprep.subr.mxu0 0.0
    %1430 = vmatpush2.xpose.msra.mxu0 0.0
    %1431 = vmatprep.subr.mxu0 0.0
    %1432 = vmatpush2.xpose.msra.mxu0 0.0
    %1433 = vmatprep.subr.mxu0 0.0
    %1434 = vmatpush2.xpose.msra.mxu0 0.0
    %1435 = vmatprep.subr.mxu0 0.0
    %1436 = vmatpush2.xpose.msra.mxu0 0.0
    %1437 = vmatprep.subr.mxu0 0.0
    %1438 = vmatpush2.xpose.msra.mxu0 0.0
    %1439 = vmatprep.subr.mxu0 0.0
    %1440 = vmatpush2.xpose.msra.mxu0 0.0
    %1441 = vmatprep.subr.mxu0 0.0
    %1442 = vmatpush2.xpose.msra.mxu0 0.0
    %1443 = vmatprep.subr.mxu0 0.0
    %1444 = vmatpush2.xpose.msra.mxu0 0.0
    %1445 = vmatprep.subr.mxu0 0.0
    %1446 = vmatpush2.xpose.msra.mxu0 0.0
    %1447 = vmatprep.subr.mxu0 0.0
    %1448 = vmatpush2.xpose.msra.mxu0 0.0
    %1449 = vmatprep.subr.mxu0 0.0
    %1450 = vmatpush2.xpose.msra.mxu0 0.0
    %1451 = vmatprep.mubr.f32.mxu0 0.0
    %1452 = vmatmul.mubr.f32.gmra.mxu0 %v1383
    %v1453 = vpop.f32.mrf.mxu0
    %v1454 = vadd.f32 0.0, %v1453
    %v1455 = vpop.f32.mrf.mxu0
    %1456 = vdwg.mxu0
    %v1457 = vmul.f32 %v1454, 0.35355338
    %v1458 = vsel %vm160, %v1457, -inf
    %1459 = vmax.xlane.f32.xlu0 %v1458
    %v1460 = vpop.xlane.xlu0 %1459
    %v1461 = vsub.f32 %v1457, %v1460
    %v1462 = vmul.f32 %v1461, 1.442695
    %v1463 = vpow.pop %v1462
    %v1464 = vsel %vm160, %v1463, 0.0
    %1465 = vadd.xlane.f32.xlu0 %v1464
    %v1466 = vpop.xlane.xlu0 %1465
    %v1467 = vrcp.pop %v1466
    %v1468 = vmul.f32 %v1463, %v1467
    %1469 = vrot.lane.b32.xlu0 %v154, 64
    %v1470 = vpop.permute.xlu0 %1469
    %1472 = vxpose.xlu0.b32.start [1/16] %v1470, 128
    %1473 = vxpose.xlu0.b32.cont [2/16] 0.0, 128
    %1474 = vxpose.xlu0.b32.cont [3/16] 0.0, 128
    %1475 = vxpose.xlu0.b32.cont [4/16] 0.0, 128
    %1476 = vxpose.xlu0.b32.cont [5/16] 0.0, 128
    %1477 = vxpose.xlu0.b32.cont [6/16] 0.0, 128
    %1478 = vxpose.xlu0.b32.cont [7/16] 0.0, 128
    %1479 = vxpose.xlu0.b32.cont [8/16] 0.0, 128
    %1480 = vxpose.xlu0.b32.cont [9/16] 0.0, 128
    %1481 = vxpose.xlu0.b32.cont [10/16] 0.0, 128
    %1482 = vxpose.xlu0.b32.cont [11/16] 0.0, 128
    %1483 = vxpose.xlu0.b32.cont [12/16] 0.0, 128
    %1484 = vxpose.xlu0.b32.cont [13/16] 0.0, 128
    %1485 = vxpose.xlu0.b32.cont [14/16] 0.0, 128
    %1486 = vxpose.xlu0.b32.cont [15/16] 0.0, 128
    %1487 = vxpose.xlu0.b32.end [16/16] 0.0, 128
    %v1488 = vpop.trf.xlu0
    %v1489 = vpop.trf.xlu0
    %v1490 = vpop.trf.xlu0
    %v1491 = vpop.trf.xlu0
    %v1492 = vpop.trf.xlu0
    %v1493 = vpop.trf.xlu0
    %v1494 = vpop.trf.xlu0
    %v1495 = vpop.trf.xlu0
    %v1496 = vpop.trf.xlu0
    %v1497 = vpop.trf.xlu0
    %v1498 = vpop.trf.xlu0
    %v1499 = vpop.trf.xlu0
    %v1500 = vpop.trf.xlu0
    %v1501 = vpop.trf.xlu0
    %v1502 = vpop.trf.xlu0
    %v1503 = vpop.trf.xlu0
    %v1505 = vsel %vm160, %v1488, 0
    %v1508 = vsel %vm160, %v1468, 0
    %1510 = vmatprep.subr.mxu0 0.0
    %1511 = vmatpush1.xpose.msra.mxu0 0.0
    %1512 = vmatprep.subr.mxu0 0.0
    %1513 = vmatpush1.xpose.msra.mxu0 0.0
    %1514 = vmatprep.subr.mxu0 0.0
    %1515 = vmatpush1.xpose.msra.mxu0 0.0
    %1516 = vmatprep.subr.mxu0 0.0
    %1517 = vmatpush1.xpose.msra.mxu0 0.0
    %1518 = vmatprep.subr.mxu0 0.0
    %1519 = vmatpush1.xpose.msra.mxu0 0.0
    %1520 = vmatprep.subr.mxu0 0.0
    %1521 = vmatpush1.xpose.msra.mxu0 0.0
    %1522 = vmatprep.subr.mxu0 0.0
    %1523 = vmatpush1.xpose.msra.mxu0 0.0
    %1524 = vmatprep.subr.mxu0 0.0
    %1525 = vmatpush1.xpose.msra.mxu0 0.0
    %1526 = vmatprep.subr.mxu0 0.0
    %1527 = vmatpush1.xpose.msra.mxu0 0.0
    %1528 = vmatprep.subr.mxu0 0.0
    %1529 = vmatpush1.xpose.msra.mxu0 0.0
    %1530 = vmatprep.subr.mxu0 0.0
    %1531 = vmatpush1.xpose.msra.mxu0 0.0
    %1532 = vmatprep.subr.mxu0 0.0
    %1533 = vmatpush1.xpose.msra.mxu0 0.0
    %1534 = vmatprep.subr.mxu0 0.0
    %1535 = vmatpush1.xpose.msra.mxu0 0.0
    %1536 = vmatprep.subr.mxu0 0.0
    %1537 = vmatpush1.xpose.msra.mxu0 0.0
    %1538 = vmatprep.subr.mxu0 0.0
    %1539 = vmatpush1.xpose.msra.mxu0 0.0
    %1540 = vmatprep.subr.mxu0 0.0
    %1541 = vmatpush1.xpose.msra.mxu0 %v1508
    %1542 = vmatprep.subr.mxu0 0.0
    %1543 = vmatpush2.xpose.msra.mxu0 0.0
    %1544 = vmatprep.subr.mxu0 0.0
    %1545 = vmatpush2.xpose.msra.mxu0 0.0
    %1546 = vmatprep.subr.mxu0 0.0
    %1547 = vmatpush2.xpose.msra.mxu0 0.0
    %1548 = vmatprep.subr.mxu0 0.0
    %1549 = vmatpush2.xpose.msra.mxu0 0.0
    %1550 = vmatprep.subr.mxu0 0.0
    %1551 = vmatpush2.xpose.msra.mxu0 0.0
    %1552 = vmatprep.subr.mxu0 0.0
    %1553 = vmatpush2.xpose.msra.mxu0 0.0
    %1554 = vmatprep.subr.mxu0 0.0
    %1555 = vmatpush2.xpose.msra.mxu0 0.0
    %1556 = vmatprep.subr.mxu0 0.0
    %1557 = vmatpush2.xpose.msra.mxu0 0.0
    %1558 = vmatprep.subr.mxu0 0.0
    %1559 = vmatpush2.xpose.msra.mxu0 0.0
    %1560 = vmatprep.subr.mxu0 0.0
    %1561 = vmatpush2.xpose.msra.mxu0 0.0
    %1562 = vmatprep.subr.mxu0 0.0
    %1563 = vmatpush2.xpose.msra.mxu0 0.0
    %1564 = vmatprep.subr.mxu0 0.0
    %1565 = vmatpush2.xpose.msra.mxu0 0.0
    %1566 = vmatprep.subr.mxu0 0.0
    %1567 = vmatpush2.xpose.msra.mxu0 0.0
    %1568 = vmatprep.subr.mxu0 0.0
    %1569 = vmatpush2.xpose.msra.mxu0 0.0
    %1570 = vmatprep.subr.mxu0 0.0
    %1571 = vmatpush2.xpose.msra.mxu0 0.0
    %1572 = vmatprep.subr.mxu0 0.0
    %1573 = vmatpush2.xpose.msra.mxu0 0.0
    %1574 = vmatprep.mubr.f32.mxu0 0.0
    %1575 = vmatmul.mubr.f32.gmra.mxu0 %v1505
    %v1576 = vpop.f32.mrf.mxu0
    %v1577 = vadd.f32 0.0, %v1576
    %v1578 = vpop.f32.mrf.mxu0
    %1579 = vdwg.mxu0
    %1580 = vrot.lane.b32.xlu0 %v154, 56
    %v1581 = vpop.permute.xlu0 %1580
    %1582 = vrot.lane.b32.xlu0 %v154, 48
    %v1583 = vpop.permute.xlu0 %1582
    %v1584 = vsel %vm160, %v1581, 0
    %v1586 = vsel %vm160, %v1583, 0
    %1588 = vmatprep.subr.mxu0 0.0
    %1589 = vmatpush1.xpose.msra.mxu0 0.0
    %1590 = vmatprep.subr.mxu0 0.0
    %1591 = vmatpush1.xpose.msra.mxu0 0.0
    %1592 = vmatprep.subr.mxu0 0.0
    %1593 = vmatpush1.xpose.msra.mxu0 0.0
    %1594 = vmatprep.subr.mxu0 0.0
    %1595 = vmatpush1.xpose.msra.mxu0 0.0
    %1596 = vmatprep.subr.mxu0 0.0
    %1597 = vmatpush1.xpose.msra.mxu0 0.0
    %1598 = vmatprep.subr.mxu0 0.0
    %1599 = vmatpush1.xpose.msra.mxu0 0.0
    %1600 = vmatprep.subr.mxu0 0.0
    %1601 = vmatpush1.xpose.msra.mxu0 0.0
    %1602 = vmatprep.subr.mxu0 0.0
    %1603 = vmatpush1.xpose.msra.mxu0 0.0
    %1604 = vmatprep.subr.mxu0 0.0
    %1605 = vmatpush1.xpose.msra.mxu0 0.0
    %1606 = vmatprep.subr.mxu0 0.0
    %1607 = vmatpush1.xpose.msra.mxu0 0.0
    %1608 = vmatprep.subr.mxu0 0.0
    %1609 = vmatpush1.xpose.msra.mxu0 0.0
    %1610 = vmatprep.subr.mxu0 0.0
    %1611 = vmatpush1.xpose.msra.mxu0 0.0
    %1612 = vmatprep.subr.mxu0 0.0
    %1613 = vmatpush1.xpose.msra.mxu0 0.0
    %1614 = vmatprep.subr.mxu0 0.0
    %1615 = vmatpush1.xpose.msra.mxu0 0.0
    %1616 = vmatprep.subr.mxu0 0.0
    %1617 = vmatpush1.xpose.msra.mxu0 0.0
    %1618 = vmatprep.subr.mxu0 0.0
    %1619 = vmatpush1.xpose.msra.mxu0 %v1586
    %1620 = vmatprep.subr.mxu0 0.0
    %1621 = vmatpush2.xpose.msra.mxu0 0.0
    %1622 = vmatprep.subr.mxu0 0.0
    %1623 = vmatpush2.xpose.msra.mxu0 0.0
    %1624 = vmatprep.subr.mxu0 0.0
    %1625 = vmatpush2.xpose.msra.mxu0 0.0
    %1626 = vmatprep.subr.mxu0 0.0
    %1627 = vmatpush2.xpose.msra.mxu0 0.0
    %1628 = vmatprep.subr.mxu0 0.0
    %1629 = vmatpush2.xpose.msra.mxu0 0.0
    %1630 = vmatprep.subr.mxu0 0.0
    %1631 = vmatpush2.xpose.msra.mxu0 0.0
    %1632 = vmatprep.subr.mxu0 0.0
    %1633 = vmatpush2.xpose.msra.mxu0 0.0
    %1634 = vmatprep.subr.mxu0 0.0
    %1635 = vmatpush2.xpose.msra.mxu0 0.0
    %1636 = vmatprep.subr.mxu0 0.0
    %1637 = vmatpush2.xpose.msra.mxu0 0.0
    %1638 = vmatprep.subr.mxu0 0.0
    %1639 = vmatpush2.xpose.msra.mxu0 0.0
    %1640 = vmatprep.subr.mxu0 0.0
    %1641 = vmatpush2.xpose.msra.mxu0 0.0
    %1642 = vmatprep.subr.mxu0 0.0
    %1643 = vmatpush2.xpose.msra.mxu0 0.0
    %1644 = vmatprep.subr.mxu0 0.0
    %1645 = vmatpush2.xpose.msra.mxu0 0.0
    %1646 = vmatprep.subr.mxu0 0.0
    %1647 = vmatpush2.xpose.msra.mxu0 0.0
    %1648 = vmatprep.subr.mxu0 0.0
    %1649 = vmatpush2.xpose.msra.mxu0 0.0
    %1650 = vmatprep.subr.mxu0 0.0
    %1651 = vmatpush2.xpose.msra.mxu0 0.0
    %1652 = vmatprep.mubr.f32.mxu0 0.0
    %1653 = vmatmul.mubr.f32.gmra.mxu0 %v1584
    %v1654 = vpop.f32.mrf.mxu0
    %v1655 = vadd.f32 0.0, %v1654
    %v1656 = vpop.f32.mrf.mxu0
    %1657 = vdwg.mxu0
    %v1658 = vmul.f32 %v1655, 0.35355338
    %v1659 = vsel %vm160, %v1658, -inf
    %1660 = vmax.xlane.f32.xlu0 %v1659
    %v1661 = vpop.xlane.xlu0 %1660
    %v1662 = vsub.f32 %v1658, %v1661
    %v1663 = vmul.f32 %v1662, 1.442695
    %v1664 = vpow.pop %v1663
    %v1665 = vsel %vm160, %v1664, 0.0
    %1666 = vadd.xlane.f32.xlu0 %v1665
    %v1667 = vpop.xlane.xlu0 %1666
    %v1668 = vrcp.pop %v1667
    %v1669 = vmul.f32 %v1664, %v1668
    %1670 = vrot.lane.b32.xlu0 %v154, 40
    %v1671 = vpop.permute.xlu0 %1670
    %1673 = vxpose.xlu0.b32.start [1/16] %v1671, 128
    %1674 = vxpose.xlu0.b32.cont [2/16] 0.0, 128
    %1675 = vxpose.xlu0.b32.cont [3/16] 0.0, 128
    %1676 = vxpose.xlu0.b32.cont [4/16] 0.0, 128
    %1677 = vxpose.xlu0.b32.cont [5/16] 0.0, 128
    %1678 = vxpose.xlu0.b32.cont [6/16] 0.0, 128
    %1679 = vxpose.xlu0.b32.cont [7/16] 0.0, 128
    %1680 = vxpose.xlu0.b32.cont [8/16] 0.0, 128
    %1681 = vxpose.xlu0.b32.cont [9/16] 0.0, 128
    %1682 = vxpose.xlu0.b32.cont [10/16] 0.0, 128
    %1683 = vxpose.xlu0.b32.cont [11/16] 0.0, 128
    %1684 = vxpose.xlu0.b32.cont [12/16] 0.0, 128
    %1685 = vxpose.xlu0.b32.cont [13/16] 0.0, 128
    %1686 = vxpose.xlu0.b32.cont [14/16] 0.0, 128
    %1687 = vxpose.xlu0.b32.cont [15/16] 0.0, 128
    %1688 = vxpose.xlu0.b32.end [16/16] 0.0, 128
    %v1689 = vpop.trf.xlu0
    %v1690 = vpop.trf.xlu0
    %v1691 = vpop.trf.xlu0
    %v1692 = vpop.trf.xlu0
    %v1693 = vpop.trf.xlu0
    %v1694 = vpop.trf.xlu0
    %v1695 = vpop.trf.xlu0
    %v1696 = vpop.trf.xlu0
    %v1697 = vpop.trf.xlu0
    %v1698 = vpop.trf.xlu0
    %v1699 = vpop.trf.xlu0
    %v1700 = vpop.trf.xlu0
    %v1701 = vpop.trf.xlu0
    %v1702 = vpop.trf.xlu0
    %v1703 = vpop.trf.xlu0
    %v1704 = vpop.trf.xlu0
    %v1706 = vsel %vm160, %v1689, 0
    %v1709 = vsel %vm160, %v1669, 0
    %1711 = vmatprep.subr.mxu0 0.0
    %1712 = vmatpush1.xpose.msra.mxu0 0.0
    %1713 = vmatprep.subr.mxu0 0.0
    %1714 = vmatpush1.xpose.msra.mxu0 0.0
    %1715 = vmatprep.subr.mxu0 0.0
    %1716 = vmatpush1.xpose.msra.mxu0 0.0
    %1717 = vmatprep.subr.mxu0 0.0
    %1718 = vmatpush1.xpose.msra.mxu0 0.0
    %1719 = vmatprep.subr.mxu0 0.0
    %1720 = vmatpush1.xpose.msra.mxu0 0.0
    %1721 = vmatprep.subr.mxu0 0.0
    %1722 = vmatpush1.xpose.msra.mxu0 0.0
    %1723 = vmatprep.subr.mxu0 0.0
    %1724 = vmatpush1.xpose.msra.mxu0 0.0
    %1725 = vmatprep.subr.mxu0 0.0
    %1726 = vmatpush1.xpose.msra.mxu0 0.0
    %1727 = vmatprep.subr.mxu0 0.0
    %1728 = vmatpush1.xpose.msra.mxu0 0.0
    %1729 = vmatprep.subr.mxu0 0.0
    %1730 = vmatpush1.xpose.msra.mxu0 0.0
    %1731 = vmatprep.subr.mxu0 0.0
    %1732 = vmatpush1.xpose.msra.mxu0 0.0
    %1733 = vmatprep.subr.mxu0 0.0
    %1734 = vmatpush1.xpose.msra.mxu0 0.0
    %1735 = vmatprep.subr.mxu0 0.0
    %1736 = vmatpush1.xpose.msra.mxu0 0.0
    %1737 = vmatprep.subr.mxu0 0.0
    %1738 = vmatpush1.xpose.msra.mxu0 0.0
    %1739 = vmatprep.subr.mxu0 0.0
    %1740 = vmatpush1.xpose.msra.mxu0 0.0
    %1741 = vmatprep.subr.mxu0 0.0
    %1742 = vmatpush1.xpose.msra.mxu0 %v1709
    %1743 = vmatprep.subr.mxu0 0.0
    %1744 = vmatpush2.xpose.msra.mxu0 0.0
    %1745 = vmatprep.subr.mxu0 0.0
    %1746 = vmatpush2.xpose.msra.mxu0 0.0
    %1747 = vmatprep.subr.mxu0 0.0
    %1748 = vmatpush2.xpose.msra.mxu0 0.0
    %1749 = vmatprep.subr.mxu0 0.0
    %1750 = vmatpush2.xpose.msra.mxu0 0.0
    %1751 = vmatprep.subr.mxu0 0.0
    %1752 = vmatpush2.xpose.msra.mxu0 0.0
    %1753 = vmatprep.subr.mxu0 0.0
    %1754 = vmatpush2.xpose.msra.mxu0 0.0
    %1755 = vmatprep.subr.mxu0 0.0
    %1756 = vmatpush2.xpose.msra.mxu0 0.0
    %1757 = vmatprep.subr.mxu0 0.0
    %1758 = vmatpush2.xpose.msra.mxu0 0.0
    %1759 = vmatprep.subr.mxu0 0.0
    %1760 = vmatpush2.xpose.msra.mxu0 0.0
    %1761 = vmatprep.subr.mxu0 0.0
    %1762 = vmatpush2.xpose.msra.mxu0 0.0
    %1763 = vmatprep.subr.mxu0 0.0
    %1764 = vmatpush2.xpose.msra.mxu0 0.0
    %1765 = vmatprep.subr.mxu0 0.0
    %1766 = vmatpush2.xpose.msra.mxu0 0.0
    %1767 = vmatprep.subr.mxu0 0.0
    %1768 = vmatpush2.xpose.msra.mxu0 0.0
    %1769 = vmatprep.subr.mxu0 0.0
    %1770 = vmatpush2.xpose.msra.mxu0 0.0
    %1771 = vmatprep.subr.mxu0 0.0
    %1772 = vmatpush2.xpose.msra.mxu0 0.0
    %1773 = vmatprep.subr.mxu0 0.0
    %1774 = vmatpush2.xpose.msra.mxu0 0.0
    %1775 = vmatprep.mubr.f32.mxu0 0.0
    %1776 = vmatmul.mubr.f32.gmra.mxu0 %v1706
    %v1777 = vpop.f32.mrf.mxu0
    %v1778 = vadd.f32 0.0, %v1777
    %v1779 = vpop.f32.mrf.mxu0
    %1780 = vdwg.mxu0
    %1782 = vrot.lane.b32.xlu0 %v1376, 8
    %v1783 = vpop.permute.xlu0 %1782
    %1786 = vrot.lane.b32.xlu0 %v1577, 16
    %v1787 = vpop.permute.xlu0 %1786
    %1790 = vrot.lane.b32.xlu0 %v1778, 24
    %v1791 = vpop.permute.xlu0 %1790
    %v1793 = vsel %vm160, %v1175, %v1783
    %v1794 = vsel %vm974, %v1793, %v1787
    %v1795 = vsel %vm976, %v1794, %v1791
    %v1796 = vld [vmem:[#allocation7] sm:$0xff]
    %v1797 = vld [vmem:[#allocation7 + $0x8] sm:$0xff]
    %v1798 = vld [vmem:[#allocation7 + $0x10] sm:$0xff]
    %v1799 = vld [vmem:[#allocation7 + $0x18] sm:$0xff]
    %v1800 = vld [vmem:[%s4] sm:$0x1]
    %v1802 = vlaneseq
    %v1803 = vshrl.u32 %v1802, 7
    %v1804 = vsub.s32 0, %v1803
    %v1805 = vrot.slane %v1800, %v1804
    %v1808 = vsel %vm75, %v977, 0
    %v1811 = vsel %vm75, %v1795, 0
    %1813 = vmatprep.subr.mxu0 0.0
    %1814 = vmatpush1.msra.mxu0 0.0
    %1815 = vmatprep.subr.mxu0 0.0
    %1816 = vmatpush1.msra.mxu0 0.0
    %1817 = vmatprep.subr.mxu0 0.0
    %1818 = vmatpush1.msra.mxu0 0.0
    %1819 = vmatprep.subr.mxu0 0.0
    %1820 = vmatpush1.msra.mxu0 0.0
    %1821 = vmatprep.subr.mxu0 0.0
    %1822 = vmatpush1.msra.mxu0 0.0
    %1823 = vmatprep.subr.mxu0 0.0
    %1824 = vmatpush1.msra.mxu0 0.0
    %1825 = vmatprep.subr.mxu0 0.0
    %1826 = vmatpush1.msra.mxu0 0.0
    %1827 = vmatprep.subr.mxu0 0.0
    %1828 = vmatpush1.msra.mxu0 0.0
    %1829 = vmatprep.subr.mxu0 0.0
    %1830 = vmatpush1.msra.mxu0 0.0
    %1831 = vmatprep.subr.mxu0 0.0
    %1832 = vmatpush1.msra.mxu0 0.0
    %1833 = vmatprep.subr.mxu0 0.0
    %1834 = vmatpush1.msra.mxu0 0.0
    %1835 = vmatprep.subr.mxu0 0.0
    %1836 = vmatpush1.msra.mxu0 0.0
    %1837 = vmatprep.subr.mxu0 0.0
    %1838 = vmatpush1.msra.mxu0 %v1799
    %1839 = vmatprep.subr.mxu0 0.0
    %1840 = vmatpush1.msra.mxu0 %v1798
    %1841 = vmatprep.subr.mxu0 0.0
    %1842 = vmatpush1.msra.mxu0 %v1797
    %1843 = vmatprep.subr.mxu0 0.0
    %1844 = vmatpush1.msra.mxu0 %v1796
    %1845 = vmatprep.subr.mxu0 0.0
    %1846 = vmatpush2.msra.mxu0 0.0
    %1847 = vmatprep.subr.mxu0 0.0
    %1848 = vmatpush2.msra.mxu0 0.0
    %1849 = vmatprep.subr.mxu0 0.0
    %1850 = vmatpush2.msra.mxu0 0.0
    %1851 = vmatprep.subr.mxu0 0.0
    %1852 = vmatpush2.msra.mxu0 0.0
    %1853 = vmatprep.subr.mxu0 0.0
    %1854 = vmatpush2.msra.mxu0 0.0
    %1855 = vmatprep.subr.mxu0 0.0
    %1856 = vmatpush2.msra.mxu0 0.0
    %1857 = vmatprep.subr.mxu0 0.0
    %1858 = vmatpush2.msra.mxu0 0.0
    %1859 = vmatprep.subr.mxu0 0.0
    %1860 = vmatpush2.msra.mxu0 0.0
    %1861 = vmatprep.subr.mxu0 0.0
    %1862 = vmatpush2.msra.mxu0 0.0
    %1863 = vmatprep.subr.mxu0 0.0
    %1864 = vmatpush2.msra.mxu0 0.0
    %1865 = vmatprep.subr.mxu0 0.0
    %1866 = vmatpush2.msra.mxu0 0.0
    %1867 = vmatprep.subr.mxu0 0.0
    %1868 = vmatpush2.msra.mxu0 0.0
    %1869 = vmatprep.subr.mxu0 0.0
    %1870 = vmatpush2.msra.mxu0 0.0
    %1871 = vmatprep.subr.mxu0 0.0
    %1872 = vmatpush2.msra.mxu0 0.0
    %1873 = vmatprep.subr.mxu0 0.0
    %1874 = vmatpush2.msra.mxu0 0.0
    %1875 = vmatprep.subr.mxu0 0.0
    %1876 = vmatpush2.msra.mxu0 0.0
    %1877 = vmatprep.mubr.f32.mxu0 0.0
    %1878 = vmatmul.mubr.f32.gmra.mxu0 %v1808
    %v1879 = vpop.f32.mrf.mxu0
    %v1880 = vadd.f32 %v1805, %v1879
    %v1881 = vpop.f32.mrf.mxu0
    %1882 = vmatprep.mubr.f32.mxu0 0.0
    %1883 = vmatmul.mubr.f32.gmra.mxu0 %v1811
    %v1884 = vpop.f32.mrf.mxu0
    %v1885 = vadd.f32 %v1805, %v1884
    %v1886 = vpop.f32.mrf.mxu0
    %1887 = vdwg.mxu0
    %1888 = vst.msk [vmem:[#allocation8] sm:$0xff] %vm75, %v1880
    %1889 = vst.msk [vmem:[#allocation8 + $0x8] sm:$0xff] %vm75, %v1885
    // Predicated region
    $region34: #{tpu_custom_call.1} parent=1 // pred_check
      _
    $region35: #{tpu_custom_call.1} parent=1 // pred_check_branch
      %1891 = sbr.rel (0) target = $region37
    $region36: #{tpu_custom_call.1} parent=1 // pred_region
      %s1893 = ssub.s32 256, 256
      %1894 = vsyncadd [#allocation4], %s1893
      %s1895 = sshll.u32 [#allocation8], 4
      %s1896 = int_to_ptr.vmem [resolvable:$true] %s1895
      %1901 = dma.vmem_to_hbm [thread:$0]  %s1896, 256, %s5, [#allocation4], 128, 128, 8
    $region37: #{tpu_custom_call.1} parent=1 // pred_fallthru
      _
    // Predicated region
    $region38: #{tpu_custom_call.1} parent=1 // pred_check
      _
    $region39: #{tpu_custom_call.1} parent=1 // pred_check_branch
      %1903 = sbr.rel (0) target = $region41
    $region40: #{tpu_custom_call.1} parent=1 // pred_region
      %1904 = dma.done [#allocation4], 256
    $region41: #{tpu_custom_call.1} parent=1 // pred_fallthru
      _
    %1905 = vsyncpa [#allocation3], 1
    %1906 = vsyncpa [#allocation6], 1
    %1907 = vsyncpa [#allocation4], 1

</llo_original>
